<compile_context>
chip_gen: v6e
topology: v6e:2x2x1
jax: 0.10.0
libtpu: 0.0.40
codegen_flags: <defaults>
</compile_context>

<pallas_src>
import functools
import math

import jax
import jax.numpy as jnp
from jax import lax
from jax.experimental import pallas as pl
from jax.experimental.pallas import tpu as pltpu


def _mha_flash_kernel(x_q_ref, x_kv_ref, w_q_t_ref, b_q_ref, w_kv_t_ref,
                      b_kv_ref, w_out_t_ref, b_out_ref, o_ref,
                      q_scr, kv_scr, m_scr, l_scr, acc_scr,
                      *, num_heads, scale, cache_kv):
    """Grid = (batch, query-tile, key-tile); key-tile is the innermost axis.

    x_q_ref    : (tq, C)        query rows for this (b, qi) tile (batch squeezed)
    x_kv_ref   : (tk, C)        key/value rows for this (b, ki) tile
    w_q_t_ref  : (C, C)   bf16  W_q^T
    b_q_ref    : (1, C)   f32   q bias
    w_kv_t_ref : (C, 2C)  bf16  [W_k^T | W_v^T]
    b_kv_ref   : (1, 2C)  f32   k/v bias
    w_out_t_ref: (C, C)   bf16  out_proj.weight^T
    b_out_ref  : (1, C)   f32   out_proj.bias
    o_ref      : (tq, C)        output rows
    q_scr      : (tq, C)  bf16  scaled Q (computed once per (b, qi))
    kv_scr     : (S, 2C) or (tk, 2C) bf16  cached projected [K | V]
    m_scr,l_scr: (H, tq, 1) f32 per-head running max / denominator
    acc_scr    : (tq, C)  f32   context accumulator (head h -> cols h*Dh:(h+1)*Dh)
    """
    qi = pl.program_id(1)
    ki = pl.program_id(2)
    nk = pl.num_programs(2)
    H = num_heads
    tq, C = acc_scr.shape
    tk = x_kv_ref.shape[0]
    Dh = C // H

    # ---- once per (b, q-tile): project + scale Q, reset running stats ----
    @pl.when(ki == 0)
    def _init():
        xq = x_q_ref[...].astype(jnp.bfloat16)
        q = jnp.dot(xq, w_q_t_ref[...], preferred_element_type=jnp.float32)
        q = (q + b_q_ref[...]) * scale              # fuse 1/sqrt(Dh) once
        q_scr[...] = q.astype(jnp.bfloat16)
        m_scr[...] = jnp.full(m_scr.shape, -1e30, dtype=jnp.float32)
        l_scr[...] = jnp.zeros(l_scr.shape, jnp.float32)
        acc_scr[...] = jnp.zeros(acc_scr.shape, jnp.float32)

    # ---- project K/V for this key tile (one fused (tk,C)x(C,2C) matmul) ----
    # With cache_kv, this runs only on the qi == 0 pass; later query tiles
    # reuse the VMEM-resident projected K/V.
    off = pl.multiple_of(ki * tk, tk) if cache_kv else 0

    def _project_kv():
        xkv = x_kv_ref[...].astype(jnp.bfloat16)
        kv = jnp.dot(xkv, w_kv_t_ref[...], preferred_element_type=jnp.float32)
        kv = kv + b_kv_ref[...]                      # (tk, 2C) f32
        kv_scr[pl.ds(off, tk), :] = kv.astype(jnp.bfloat16)

    if cache_kv:
        pl.when(qi == 0)(_project_kv)
    else:
        _project_kv()

    k_all = kv_scr[pl.ds(off, tk), :C]               # (tk, C) bf16
    v_all = kv_scr[pl.ds(off, tk), C:]               # (tk, C) bf16

    # ---- per-head online-softmax update (2-D dots on contiguous lane slices) ----
    for h in range(H):                               # static / unrolled
        hs, he = h * Dh, (h + 1) * Dh
        q_h = q_scr[:, hs:he]                        # (tq, Dh) bf16 (pre-scaled)
        k_h = k_all[:, hs:he]                        # (tk, Dh) bf16
        v_h = v_all[:, hs:he]                        # (tk, Dh) bf16

        # scores: contract the trailing Dh dims of both (no explicit K transpose)
        s = lax.dot_general(q_h, k_h, (((1,), (1,)), ((), ())),
                            preferred_element_type=jnp.float32)   # (tq, tk) f32

        m_prev = m_scr[h]                            # (tq, 1)
        l_prev = l_scr[h]
        m_new = jnp.maximum(m_prev, jnp.max(s, axis=-1, keepdims=True))
        alpha = jnp.exp(m_prev - m_new)              # f32 softmax math (v5e-safe)
        p = jnp.exp(s - m_new)                       # (tq, tk) f32
        l_scr[h] = alpha * l_prev + jnp.sum(p, axis=-1, keepdims=True)
        m_scr[h] = m_new
        acc_scr[:, hs:he] = (alpha * acc_scr[:, hs:he] +
                             jnp.dot(p.astype(jnp.bfloat16), v_h,
                                     preferred_element_type=jnp.float32))

    # ---- last key tile: normalize, output projection, lane-dense writeback ----
    @pl.when(ki == nk - 1)
    def _finalize():
        for h in range(H):
            hs, he = h * Dh, (h + 1) * Dh
            inv_l = pl.reciprocal(l_scr[h], approx=True)   # EUP slot, ~free
            acc_scr[:, hs:he] = acc_scr[:, hs:he] * inv_l
        ctx = acc_scr[...].astype(jnp.bfloat16)            # (tq, C)
        out = jnp.dot(ctx, w_out_t_ref[...], preferred_element_type=jnp.float32)
        out = out + b_out_ref[...]
        o_ref[...] = out.astype(o_ref.dtype)


def multi_head_attention(query, params, num_heads, key=None, *,
                         q_tile=None, kv_tile=None,
                         kv_cache_vmem_budget=8 * 1024 * 1024):
    """query: (B, T, C); key: optional (B, S, C) (defaults to query = self-attn).

    Matches MultiHeadAttention.forward (batch-first in/out, eval mode, no masks).
    """
    if key is None:
        key = query
    B, T, C = query.shape
    Bk, S, Ck = key.shape
    assert Bk == B and Ck == C
    H = num_heads
    assert C % H == 0
    Dh = C // H

    tq = q_tile if q_tile is not None else (256 if T % 256 == 0 else T)
    tk = kv_tile if kv_tile is not None else (256 if S % 256 == 0 else S)
    assert T % tq == 0 and S % tk == 0

    # Cache the projected K/V for a whole batch element in VMEM iff it fits;
    # otherwise fall back to re-projecting each key tile per query tile.
    kv_cache_bytes = S * 2 * C * 2                          # bf16
    cache_kv = kv_cache_bytes <= kv_cache_vmem_budget
    kv_scr_rows = S if cache_kv else tk

    # Pre-split / pre-transpose projection weights (host-side, negligible cost).
    # Weights go to bf16 for the MXU; biases stay f32 (added post-accumulation).
    w_in = params['in_proj_weight']                         # (3C, C)
    b_in = params['in_proj_bias']                           # (3C,)
    w_q_t = w_in[:C].T.astype(jnp.bfloat16)                 # (C, C)
    w_kv_t = w_in[C:].T.astype(jnp.bfloat16)                # (C, 2C)
    b_q = b_in[:C].reshape(1, C).astype(jnp.float32)
    b_kv = b_in[C:].reshape(1, 2 * C).astype(jnp.float32)
    w_out_t = params['out_proj_weight'].T.astype(jnp.bfloat16)   # (C, C)
    b_out = params['out_proj_bias'].reshape(1, C).astype(jnp.float32)

    kernel = functools.partial(_mha_flash_kernel, num_heads=H,
                               scale=1.0 / math.sqrt(Dh), cache_kv=cache_kv)

    if cache_kv:
        # Only fetch key/value rows while qi == 0 (the pass that projects and
        # caches them); afterwards pin the block index -> no re-DMA.
        kv_index_map = lambda b, qi, ki: (b, jnp.where(qi == 0, ki, 0), 0)
        dim_sem = ("parallel", "arbitrary", "arbitrary")
    else:
        kv_index_map = lambda b, qi, ki: (b, ki, 0)
        dim_sem = ("parallel", "parallel", "arbitrary")

    grid = (B, T // tq, S // tk)
    # TODO(synk): single-buffer (pipeline_mode=pl.Buffered(1)) the grid-invariant
    # weight specs to halve their VMEM reservation once that mode is reliable.
    return pl.pallas_call(
        kernel,
        out_shape=jax.ShapeDtypeStruct((B, T, C), query.dtype),
        grid_spec=pltpu.PrefetchScalarGridSpec(
            num_scalar_prefetch=0,
            grid=grid,
            in_specs=[
                # query rows: depend on (b, qi) only
                pl.BlockSpec((pl.Squeezed(), tq, C), lambda b, qi, ki: (b, qi, 0)),
                # key/value rows
                pl.BlockSpec((pl.Squeezed(), tk, C), kv_index_map),
                # grid-invariant weights / biases (block index never changes)
                pl.BlockSpec((C, C), lambda b, qi, ki: (0, 0)),
                pl.BlockSpec((1, C), lambda b, qi, ki: (0, 0)),
                pl.BlockSpec((C, 2 * C), lambda b, qi, ki: (0, 0)),
                pl.BlockSpec((1, 2 * C), lambda b, qi, ki: (0, 0)),
                pl.BlockSpec((C, C), lambda b, qi, ki: (0, 0)),
                pl.BlockSpec((1, C), lambda b, qi, ki: (0, 0)),
            ],
            out_specs=pl.BlockSpec((pl.Squeezed(), tq, C),
                                   lambda b, qi, ki: (b, qi, 0)),
            scratch_shapes=[
                pltpu.VMEM((tq, C), jnp.bfloat16),             # scaled Q
                pltpu.VMEM((kv_scr_rows, 2 * C), jnp.bfloat16),  # projected [K|V]
                pltpu.VMEM((H, tq, 1), jnp.float32),           # running max  m
                pltpu.VMEM((H, tq, 1), jnp.float32),           # running sum  l
                pltpu.VMEM((tq, C), jnp.float32),              # context accumulator
            ]),
        compiler_params=pltpu.CompilerParams(
            dimension_semantics=dim_sem,
            vmem_limit_bytes=48 * 1024 * 1024),
    )(query, key, w_q_t, b_q, w_kv_t, b_kv, w_out_t, b_out)


def init_params(key, d_hid):
    """Deterministic synthetic parameters matching nn.MultiheadAttention shapes."""
    k1, k2, k3, k4 = jax.random.split(key, 4)
    bound_in = math.sqrt(6.0 / (3 * d_hid + d_hid))      # xavier_uniform-like
    in_proj_weight = jax.random.uniform(
        k1, (3 * d_hid, d_hid), jnp.float32, -bound_in, bound_in)
    in_proj_bias = jax.random.uniform(k3, (3 * d_hid,), jnp.float32, -0.1, 0.1)
    bound_out = 1.0 / math.sqrt(d_hid)
    out_proj_weight = jax.random.uniform(
        k2, (d_hid, d_hid), jnp.float32, -bound_out, bound_out)
    out_proj_bias = jax.random.uniform(k4, (d_hid,), jnp.float32, -0.1, 0.1)
    return {
        'in_proj_weight': in_proj_weight,
        'in_proj_bias': in_proj_bias,
        'out_proj_weight': out_proj_weight,
        'out_proj_bias': out_proj_bias,
    }


def _reference(x, params, num_heads):
    """Pure-JAX reference of nn.MultiheadAttention (eval, self-attn, batch-first I/O)."""
    B, T, C = x.shape
    H = num_heads
    Dh = C // H
    qkv = jnp.einsum('btc,oc->bto', x, params['in_proj_weight']) + params['in_proj_bias']
    q, k, v = qkv[..., :C], qkv[..., C:2 * C], qkv[..., 2 * C:]
    q = q.reshape(B, T, H, Dh) / math.sqrt(Dh)
    k = k.reshape(B, T, H, Dh)
    v = v.reshape(B, T, H, Dh)
    scores = jnp.einsum('bthd,bshd->bhts', q, k)
    attn = jax.nn.softmax(scores, axis=-1)
    ctx = jnp.einsum('bhts,bshd->bthd', attn, v).reshape(B, T, C)
    return jnp.einsum('btc,oc->bto', ctx, params['out_proj_weight']) + params['out_proj_bias']


if __name__ == "__main__":
    B, T, C = 2, 32, 128      # small, but lane-dense (C multiple of 128)
    num_heads = 4             # head_dim = 32

    key = jax.random.PRNGKey(0)
    kx, kp = jax.random.split(key)
    x = jax.random.normal(kx, (B, T, C), jnp.float32)
    params = init_params(kp, C)

    # Tiles of 16 rows (bf16-packing aligned) so the test exercises multiple
    # query tiles, multiple key tiles and the K/V-cache path: grid = (2, 2, 2).
    out = multi_head_attention(x, params, num_heads, q_tile=16, kv_tile=16)
    out = jax.block_until_ready(out)

    ref = _reference(x, params, num_heads)
    assert out.shape == (B, T, C)
    err = float(jnp.max(jnp.abs(out - ref)))
    # bf16 MXU operands + approximate reciprocal -> loosened tolerance vs pure f32
    assert jnp.allclose(out, ref, atol=5e-2, rtol=5e-2), f"max err {err}"
    print("KERNEL_OK")
</pallas_src>

<mosaic_0001>
module attributes {stable_mosaic.version = 11 : i64} {
  func.func @_mha_flash_kernel(%arg0: i32, %arg1: i32, %arg2: i32, %arg3: memref<1x16x128xf32, #tpu.memory_space<vmem>>, %arg4: memref<1x16x128xf32, #tpu.memory_space<vmem>>, %arg5: memref<128x128xbf16, #tpu.memory_space<vmem>>, %arg6: memref<1x128xf32, #tpu.memory_space<vmem>>, %arg7: memref<128x256xbf16, #tpu.memory_space<vmem>>, %arg8: memref<1x256xf32, #tpu.memory_space<vmem>>, %arg9: memref<128x128xbf16, #tpu.memory_space<vmem>>, %arg10: memref<1x128xf32, #tpu.memory_space<vmem>>, %arg11: memref<1x16x128xf32, #tpu.memory_space<vmem>>, %arg12: memref<16x128xbf16, #tpu.memory_space<vmem>>, %arg13: memref<32x256xbf16, #tpu.memory_space<vmem>>, %arg14: memref<4x16x1xf32, #tpu.memory_space<vmem>>, %arg15: memref<4x16x1xf32, #tpu.memory_space<vmem>>, %arg16: memref<16x128xf32, #tpu.memory_space<vmem>>) attributes {dimension_semantics = [#tpu.dimension_semantics<parallel>, #tpu.dimension_semantics<arbitrary>, #tpu.dimension_semantics<arbitrary>], iteration_bounds = array<i64: 2, 2, 2>, scalar_prefetch = 0 : i64, scratch_operands = 5 : i64, tpu.core_type = #tpu.core_type<tc>, window_params = [{transform_indices = @transform_0, window_bounds = array<i64: 1, 16, 128>}, {transform_indices = @transform_1, window_bounds = array<i64: 1, 16, 128>}, {pipeline_mode = #tpu.pipeline_mode<synchronous>, transform_indices = @transform_2, window_bounds = array<i64: 128, 128>}, {pipeline_mode = #tpu.pipeline_mode<synchronous>, transform_indices = @transform_3, window_bounds = array<i64: 1, 128>}, {pipeline_mode = #tpu.pipeline_mode<synchronous>, transform_indices = @transform_4, window_bounds = array<i64: 128, 256>}, {pipeline_mode = #tpu.pipeline_mode<synchronous>, transform_indices = @transform_5, window_bounds = array<i64: 1, 256>}, {pipeline_mode = #tpu.pipeline_mode<synchronous>, transform_indices = @transform_6, window_bounds = array<i64: 128, 128>}, {pipeline_mode = #tpu.pipeline_mode<synchronous>, transform_indices = @transform_7, window_bounds = array<i64: 1, 128>}, {transform_indices = @transform_8, window_bounds = array<i64: 1, 16, 128>}]} {
    %c0_i32 = arith.constant 0 : i32
    %0 = arith.cmpi eq, %arg2, %c0_i32 : i32
    %1 = arith.extui %0 : i1 to i32
    %c0_i32_0 = arith.constant 0 : i32
    %2 = arith.cmpi ne, %1, %c0_i32_0 : i32
    scf.if %2 {
      %c0_85 = arith.constant 0 : index
      %c0_86 = arith.constant 0 : index
      %c0_87 = arith.constant 0 : index
      %147 = vector.load %arg3[%c0_85, %c0_86, %c0_87] : memref<1x16x128xf32, #tpu.memory_space<vmem>>, vector<1x16x128xf32>
      %148 = vector.shape_cast %147 : vector<1x16x128xf32> to vector<16x128xf32>
      %149 = arith.truncf %148 : vector<16x128xf32> to vector<16x128xbf16>
      %c0_88 = arith.constant 0 : index
      %c0_89 = arith.constant 0 : index
      %150 = vector.load %arg5[%c0_88, %c0_89] : memref<128x128xbf16, #tpu.memory_space<vmem>>, vector<128x128xbf16>
      %cst_90 = arith.constant dense<0.000000e+00> : vector<16x128xf32>
      %151 = tpu.matmul %149, %150, %cst_90 {dimension_numbers = #tpu.dot_dimension_numbers<[1], [0], [0], [1], [0, 0, 1, 1], [], []>} : vector<16x128xbf16>, vector<128x128xbf16>, vector<16x128xf32> -> vector<16x128xf32>
      %c0_91 = arith.constant 0 : index
      %c0_92 = arith.constant 0 : index
      %152 = vector.load %arg6[%c0_91, %c0_92] : memref<1x128xf32, #tpu.memory_space<vmem>>, vector<1x128xf32>
      %153 = vector.broadcast %152 : vector<1x128xf32> to vector<16x128xf32>
      %154 = arith.addf %151, %153 : vector<16x128xf32>
      %cst_93 = arith.constant 0.176776692 : f32
      %155 = vector.broadcast %cst_93 : f32 to vector<16x128xf32>
      %156 = arith.mulf %154, %155 : vector<16x128xf32>
      %157 = arith.truncf %156 : vector<16x128xf32> to vector<16x128xbf16>
      %c0_94 = arith.constant 0 : index
      %c0_95 = arith.constant 0 : index
      %158 = vector.load %arg12[%c0_94, %c0_95] : memref<16x128xbf16, #tpu.memory_space<vmem>>, vector<16x128xbf16>
      tpu.vector_store %arg12[%c0_94, %c0_95], %157 {strides = array<i32>} : memref<16x128xbf16, #tpu.memory_space<vmem>>, vector<16x128xbf16>,
      %cst_96 = arith.constant -1.000000e+30 : f32
      %159 = vector.broadcast %cst_96 : f32 to vector<4x16x1xf32>
      %c0_97 = arith.constant 0 : index
      %c0_98 = arith.constant 0 : index
      %c0_99 = arith.constant 0 : index
      %160 = vector.load %arg14[%c0_97, %c0_98, %c0_99] : memref<4x16x1xf32, #tpu.memory_space<vmem>>, vector<4x16x1xf32>
      tpu.vector_store %arg14[%c0_97, %c0_98, %c0_99], %159 {strides = array<i32>} : memref<4x16x1xf32, #tpu.memory_space<vmem>>, vector<4x16x1xf32>,
      %cst_100 = arith.constant 0.000000e+00 : f32
      %161 = vector.broadcast %cst_100 : f32 to vector<4x16x1xf32>
      %c0_101 = arith.constant 0 : index
      %c0_102 = arith.constant 0 : index
      %c0_103 = arith.constant 0 : index
      %162 = vector.load %arg15[%c0_101, %c0_102, %c0_103] : memref<4x16x1xf32, #tpu.memory_space<vmem>>, vector<4x16x1xf32>
      tpu.vector_store %arg15[%c0_101, %c0_102, %c0_103], %161 {strides = array<i32>} : memref<4x16x1xf32, #tpu.memory_space<vmem>>, vector<4x16x1xf32>,
      %cst_104 = arith.constant 0.000000e+00 : f32
      %163 = vector.broadcast %cst_104 : f32 to vector<16x128xf32>
      %c0_105 = arith.constant 0 : index
      %c0_106 = arith.constant 0 : index
      %164 = vector.load %arg16[%c0_105, %c0_106] : memref<16x128xf32, #tpu.memory_space<vmem>>, vector<16x128xf32>
      tpu.vector_store %arg16[%c0_105, %c0_106], %163 {strides = array<i32>} : memref<16x128xf32, #tpu.memory_space<vmem>>, vector<16x128xf32>,
    } else {
    }
    %c16_i32 = arith.constant 16 : i32
    %3 = arith.muli %arg2, %c16_i32 : i32
    %4 = tpu.assume_multiple %3, 16 : i32
    %c0_i32_1 = arith.constant 0 : i32
    %5 = arith.cmpi eq, %arg1, %c0_i32_1 : i32
    %6 = arith.extui %5 : i1 to i32
    %c0_i32_2 = arith.constant 0 : i32
    %7 = arith.cmpi ne, %6, %c0_i32_2 : i32
    scf.if %7 {
      %c0_85 = arith.constant 0 : index
      %c0_86 = arith.constant 0 : index
      %c0_87 = arith.constant 0 : index
      %147 = vector.load %arg4[%c0_85, %c0_86, %c0_87] : memref<1x16x128xf32, #tpu.memory_space<vmem>>, vector<1x16x128xf32>
      %148 = vector.shape_cast %147 : vector<1x16x128xf32> to vector<16x128xf32>
      %149 = arith.truncf %148 : vector<16x128xf32> to vector<16x128xbf16>
      %c0_88 = arith.constant 0 : index
      %c0_89 = arith.constant 0 : index
      %150 = vector.load %arg7[%c0_88, %c0_89] : memref<128x256xbf16, #tpu.memory_space<vmem>>, vector<128x256xbf16>
      %cst_90 = arith.constant dense<0.000000e+00> : vector<16x256xf32>
      %151 = tpu.matmul %149, %150, %cst_90 {dimension_numbers = #tpu.dot_dimension_numbers<[1], [0], [0], [1], [0, 0, 1, 1], [], []>} : vector<16x128xbf16>, vector<128x256xbf16>, vector<16x256xf32> -> vector<16x256xf32>
      %c0_91 = arith.constant 0 : index
      %c0_92 = arith.constant 0 : index
      %152 = vector.load %arg8[%c0_91, %c0_92] : memref<1x256xf32, #tpu.memory_space<vmem>>, vector<1x256xf32>
      %153 = vector.broadcast %152 : vector<1x256xf32> to vector<16x256xf32>
      %154 = arith.addf %151, %153 : vector<16x256xf32>
      %155 = arith.truncf %154 : vector<16x256xf32> to vector<16x256xbf16>
      %156 = arith.index_cast %4 : i32 to index
      %c0_93 = arith.constant 0 : index
      %157 = vector.load %arg13[%156, %c0_93] : memref<32x256xbf16, #tpu.memory_space<vmem>>, vector<16x256xbf16>
      tpu.vector_store %arg13[%156, %c0_93], %155 {strides = array<i32>} : memref<32x256xbf16, #tpu.memory_space<vmem>>, vector<16x256xbf16>,
    } else {
    }
    %8 = arith.index_cast %4 : i32 to index
    %c0 = arith.constant 0 : index
    %9 = vector.load %arg13[%8, %c0] : memref<32x256xbf16, #tpu.memory_space<vmem>>, vector<16x128xbf16>
    %10 = arith.index_cast %4 : i32 to index
    %c128 = arith.constant 128 : index
    %11 = vector.load %arg13[%10, %c128] : memref<32x256xbf16, #tpu.memory_space<vmem>>, vector<16x128xbf16>
    %c0_3 = arith.constant 0 : index
    %c0_4 = arith.constant 0 : index
    %12 = vector.load %arg12[%c0_3, %c0_4] : memref<16x128xbf16, #tpu.memory_space<vmem>>, vector<16x32xbf16>
    %13 = vector.extract_strided_slice %9 {offsets = [0, 0], sizes = [16, 32], strides = [1, 1]} : vector<16x128xbf16> to vector<16x32xbf16>
    %14 = vector.extract_strided_slice %11 {offsets = [0, 0], sizes = [16, 32], strides = [1, 1]} : vector<16x128xbf16> to vector<16x32xbf16>
    %cst = arith.constant dense<0.000000e+00> : vector<16x16xf32>
    %15 = tpu.matmul %12, %13, %cst {dimension_numbers = #tpu.dot_dimension_numbers<[1], [1], [0], [0], [0, 0, 1, 0], [], []>} : vector<16x32xbf16>, vector<16x32xbf16>, vector<16x16xf32> -> vector<16x16xf32>
    %c0_5 = arith.constant 0 : index
    %c0_6 = arith.constant 0 : index
    %c0_7 = arith.constant 0 : index
    %16 = vector.load %arg14[%c0_5, %c0_6, %c0_7] : memref<4x16x1xf32, #tpu.memory_space<vmem>>, vector<1x16x1xf32>
    %17 = vector.shape_cast %16 : vector<1x16x1xf32> to vector<16x1xf32>
    %c0_8 = arith.constant 0 : index
    %c0_9 = arith.constant 0 : index
    %c0_10 = arith.constant 0 : index
    %18 = vector.load %arg15[%c0_8, %c0_9, %c0_10] : memref<4x16x1xf32, #tpu.memory_space<vmem>>, vector<1x16x1xf32>
    %19 = vector.shape_cast %18 : vector<1x16x1xf32> to vector<16x1xf32>
    %cst_11 = arith.constant dense<0xFF800000> : vector<16xf32>
    %20 = vector.multi_reduction <maximumf>, %15, %cst_11 [1] : vector<16x16xf32> to vector<16xf32>
    %21 = vector.shape_cast %20 : vector<16xf32> to vector<16x1xf32>
    %22 = arith.maximumf %17, %21 : vector<16x1xf32>
    %23 = arith.subf %17, %22 : vector<16x1xf32>
    %24 = math.exp %23 : vector<16x1xf32>
    %25 = vector.broadcast %22 : vector<16x1xf32> to vector<16x16xf32>
    %26 = arith.subf %15, %25 : vector<16x16xf32>
    %27 = math.exp %26 : vector<16x16xf32>
    %28 = arith.mulf %24, %19 : vector<16x1xf32>
    %cst_12 = arith.constant dense<0.000000e+00> : vector<16xf32>
    %29 = vector.multi_reduction <add>, %27, %cst_12 [1] : vector<16x16xf32> to vector<16xf32>
    %30 = vector.shape_cast %29 : vector<16xf32> to vector<16x1xf32>
    %31 = arith.addf %28, %30 : vector<16x1xf32>
    %c0_13 = arith.constant 0 : index
    %c0_14 = arith.constant 0 : index
    %c0_15 = arith.constant 0 : index
    %32 = vector.load %arg15[%c0_13, %c0_14, %c0_15] : memref<4x16x1xf32, #tpu.memory_space<vmem>>, vector<1x16x1xf32>
    %33 = vector.shape_cast %32 : vector<1x16x1xf32> to vector<16x1xf32>
    %34 = vector.shape_cast %31 : vector<16x1xf32> to vector<1x16x1xf32>
    tpu.vector_store %arg15[%c0_13, %c0_14, %c0_15], %34 {strides = array<i32>} : memref<4x16x1xf32, #tpu.memory_space<vmem>>, vector<1x16x1xf32>,
    %c0_16 = arith.constant 0 : index
    %c0_17 = arith.constant 0 : index
    %c0_18 = arith.constant 0 : index
    %35 = vector.load %arg14[%c0_16, %c0_17, %c0_18] : memref<4x16x1xf32, #tpu.memory_space<vmem>>, vector<1x16x1xf32>
    %36 = vector.shape_cast %35 : vector<1x16x1xf32> to vector<16x1xf32>
    %37 = vector.shape_cast %22 : vector<16x1xf32> to vector<1x16x1xf32>
    tpu.vector_store %arg14[%c0_16, %c0_17, %c0_18], %37 {strides = array<i32>} : memref<4x16x1xf32, #tpu.memory_space<vmem>>, vector<1x16x1xf32>,
    %c0_19 = arith.constant 0 : index
    %c0_20 = arith.constant 0 : index
    %38 = vector.load %arg16[%c0_19, %c0_20] : memref<16x128xf32, #tpu.memory_space<vmem>>, vector<16x32xf32>
    %39 = vector.broadcast %24 : vector<16x1xf32> to vector<16x32xf32>
    %40 = arith.mulf %39, %38 : vector<16x32xf32>
    %41 = arith.truncf %27 : vector<16x16xf32> to vector<16x16xbf16>
    %cst_21 = arith.constant dense<0.000000e+00> : vector<16x32xf32>
    %42 = tpu.matmul %41, %14, %cst_21 {dimension_numbers = #tpu.dot_dimension_numbers<[1], [0], [0], [1], [0, 0, 1, 1], [], []>} : vector<16x16xbf16>, vector<16x32xbf16>, vector<16x32xf32> -> vector<16x32xf32>
    %43 = arith.addf %40, %42 : vector<16x32xf32>
    %c0_22 = arith.constant 0 : index
    %c0_23 = arith.constant 0 : index
    %44 = vector.load %arg16[%c0_22, %c0_23] : memref<16x128xf32, #tpu.memory_space<vmem>>, vector<16x32xf32>
    tpu.vector_store %arg16[%c0_22, %c0_23], %43 {strides = array<i32>} : memref<16x128xf32, #tpu.memory_space<vmem>>, vector<16x32xf32>,
    %c0_24 = arith.constant 0 : index
    %c32 = arith.constant 32 : index
    %45 = vector.load %arg12[%c0_24, %c32] : memref<16x128xbf16, #tpu.memory_space<vmem>>, vector<16x32xbf16>
    %46 = vector.extract_strided_slice %9 {offsets = [0, 32], sizes = [16, 32], strides = [1, 1]} : vector<16x128xbf16> to vector<16x32xbf16>
    %47 = vector.extract_strided_slice %11 {offsets = [0, 32], sizes = [16, 32], strides = [1, 1]} : vector<16x128xbf16> to vector<16x32xbf16>
    %cst_25 = arith.constant dense<0.000000e+00> : vector<16x16xf32>
    %48 = tpu.matmul %45, %46, %cst_25 {dimension_numbers = #tpu.dot_dimension_numbers<[1], [1], [0], [0], [0, 0, 1, 0], [], []>} : vector<16x32xbf16>, vector<16x32xbf16>, vector<16x16xf32> -> vector<16x16xf32>
    %c1 = arith.constant 1 : index
    %c0_26 = arith.constant 0 : index
    %c0_27 = arith.constant 0 : index
    %49 = vector.load %arg14[%c1, %c0_26, %c0_27] : memref<4x16x1xf32, #tpu.memory_space<vmem>>, vector<1x16x1xf32>
    %50 = vector.shape_cast %49 : vector<1x16x1xf32> to vector<16x1xf32>
    %c1_28 = arith.constant 1 : index
    %c0_29 = arith.constant 0 : index
    %c0_30 = arith.constant 0 : index
    %51 = vector.load %arg15[%c1_28, %c0_29, %c0_30] : memref<4x16x1xf32, #tpu.memory_space<vmem>>, vector<1x16x1xf32>
    %52 = vector.shape_cast %51 : vector<1x16x1xf32> to vector<16x1xf32>
    %cst_31 = arith.constant dense<0xFF800000> : vector<16xf32>
    %53 = vector.multi_reduction <maximumf>, %48, %cst_31 [1] : vector<16x16xf32> to vector<16xf32>
    %54 = vector.shape_cast %53 : vector<16xf32> to vector<16x1xf32>
    %55 = arith.maximumf %50, %54 : vector<16x1xf32>
    %56 = arith.subf %50, %55 : vector<16x1xf32>
    %57 = math.exp %56 : vector<16x1xf32>
    %58 = vector.broadcast %55 : vector<16x1xf32> to vector<16x16xf32>
    %59 = arith.subf %48, %58 : vector<16x16xf32>
    %60 = math.exp %59 : vector<16x16xf32>
    %61 = arith.mulf %57, %52 : vector<16x1xf32>
    %cst_32 = arith.constant dense<0.000000e+00> : vector<16xf32>
    %62 = vector.multi_reduction <add>, %60, %cst_32 [1] : vector<16x16xf32> to vector<16xf32>
    %63 = vector.shape_cast %62 : vector<16xf32> to vector<16x1xf32>
    %64 = arith.addf %61, %63 : vector<16x1xf32>
    %c1_33 = arith.constant 1 : index
    %c0_34 = arith.constant 0 : index
    %c0_35 = arith.constant 0 : index
    %65 = vector.load %arg15[%c1_33, %c0_34, %c0_35] : memref<4x16x1xf32, #tpu.memory_space<vmem>>, vector<1x16x1xf32>
    %66 = vector.shape_cast %65 : vector<1x16x1xf32> to vector<16x1xf32>
    %67 = vector.shape_cast %64 : vector<16x1xf32> to vector<1x16x1xf32>
    tpu.vector_store %arg15[%c1_33, %c0_34, %c0_35], %67 {strides = array<i32>} : memref<4x16x1xf32, #tpu.memory_space<vmem>>, vector<1x16x1xf32>,
    %c1_36 = arith.constant 1 : index
    %c0_37 = arith.constant 0 : index
    %c0_38 = arith.constant 0 : index
    %68 = vector.load %arg14[%c1_36, %c0_37, %c0_38] : memref<4x16x1xf32, #tpu.memory_space<vmem>>, vector<1x16x1xf32>
    %69 = vector.shape_cast %68 : vector<1x16x1xf32> to vector<16x1xf32>
    %70 = vector.shape_cast %55 : vector<16x1xf32> to vector<1x16x1xf32>
    tpu.vector_store %arg14[%c1_36, %c0_37, %c0_38], %70 {strides = array<i32>} : memref<4x16x1xf32, #tpu.memory_space<vmem>>, vector<1x16x1xf32>,
    %c0_39 = arith.constant 0 : index
    %c32_40 = arith.constant 32 : index
    %71 = vector.load %arg16[%c0_39, %c32_40] : memref<16x128xf32, #tpu.memory_space<vmem>>, vector<16x32xf32>
    %72 = vector.broadcast %57 : vector<16x1xf32> to vector<16x32xf32>
    %73 = arith.mulf %72, %71 : vector<16x32xf32>
    %74 = arith.truncf %60 : vector<16x16xf32> to vector<16x16xbf16>
    %cst_41 = arith.constant dense<0.000000e+00> : vector<16x32xf32>
    %75 = tpu.matmul %74, %47, %cst_41 {dimension_numbers = #tpu.dot_dimension_numbers<[1], [0], [0], [1], [0, 0, 1, 1], [], []>} : vector<16x16xbf16>, vector<16x32xbf16>, vector<16x32xf32> -> vector<16x32xf32>
    %76 = arith.addf %73, %75 : vector<16x32xf32>
    %c0_42 = arith.constant 0 : index
    %c32_43 = arith.constant 32 : index
    %77 = vector.load %arg16[%c0_42, %c32_43] : memref<16x128xf32, #tpu.memory_space<vmem>>, vector<16x32xf32>
    tpu.vector_store %arg16[%c0_42, %c32_43], %76 {strides = array<i32>} : memref<16x128xf32, #tpu.memory_space<vmem>>, vector<16x32xf32>,
    %c0_44 = arith.constant 0 : index
    %c64 = arith.constant 64 : index
    %78 = vector.load %arg12[%c0_44, %c64] : memref<16x128xbf16, #tpu.memory_space<vmem>>, vector<16x32xbf16>
    %79 = vector.extract_strided_slice %9 {offsets = [0, 64], sizes = [16, 32], strides = [1, 1]} : vector<16x128xbf16> to vector<16x32xbf16>
    %80 = vector.extract_strided_slice %11 {offsets = [0, 64], sizes = [16, 32], strides = [1, 1]} : vector<16x128xbf16> to vector<16x32xbf16>
    %cst_45 = arith.constant dense<0.000000e+00> : vector<16x16xf32>
    %81 = tpu.matmul %78, %79, %cst_45 {dimension_numbers = #tpu.dot_dimension_numbers<[1], [1], [0], [0], [0, 0, 1, 0], [], []>} : vector<16x32xbf16>, vector<16x32xbf16>, vector<16x16xf32> -> vector<16x16xf32>
    %c2 = arith.constant 2 : index
    %c0_46 = arith.constant 0 : index
    %c0_47 = arith.constant 0 : index
    %82 = vector.load %arg14[%c2, %c0_46, %c0_47] : memref<4x16x1xf32, #tpu.memory_space<vmem>>, vector<1x16x1xf32>
    %83 = vector.shape_cast %82 : vector<1x16x1xf32> to vector<16x1xf32>
    %c2_48 = arith.constant 2 : index
    %c0_49 = arith.constant 0 : index
    %c0_50 = arith.constant 0 : index
    %84 = vector.load %arg15[%c2_48, %c0_49, %c0_50] : memref<4x16x1xf32, #tpu.memory_space<vmem>>, vector<1x16x1xf32>
    %85 = vector.shape_cast %84 : vector<1x16x1xf32> to vector<16x1xf32>
    %cst_51 = arith.constant dense<0xFF800000> : vector<16xf32>
    %86 = vector.multi_reduction <maximumf>, %81, %cst_51 [1] : vector<16x16xf32> to vector<16xf32>
    %87 = vector.shape_cast %86 : vector<16xf32> to vector<16x1xf32>
    %88 = arith.maximumf %83, %87 : vector<16x1xf32>
    %89 = arith.subf %83, %88 : vector<16x1xf32>
    %90 = math.exp %89 : vector<16x1xf32>
    %91 = vector.broadcast %88 : vector<16x1xf32> to vector<16x16xf32>
    %92 = arith.subf %81, %91 : vector<16x16xf32>
    %93 = math.exp %92 : vector<16x16xf32>
    %94 = arith.mulf %90, %85 : vector<16x1xf32>
    %cst_52 = arith.constant dense<0.000000e+00> : vector<16xf32>
    %95 = vector.multi_reduction <add>, %93, %cst_52 [1] : vector<16x16xf32> to vector<16xf32>
    %96 = vector.shape_cast %95 : vector<16xf32> to vector<16x1xf32>
    %97 = arith.addf %94, %96 : vector<16x1xf32>
    %c2_53 = arith.constant 2 : index
    %c0_54 = arith.constant 0 : index
    %c0_55 = arith.constant 0 : index
    %98 = vector.load %arg15[%c2_53, %c0_54, %c0_55] : memref<4x16x1xf32, #tpu.memory_space<vmem>>, vector<1x16x1xf32>
    %99 = vector.shape_cast %98 : vector<1x16x1xf32> to vector<16x1xf32>
    %100 = vector.shape_cast %97 : vector<16x1xf32> to vector<1x16x1xf32>
    tpu.vector_store %arg15[%c2_53, %c0_54, %c0_55], %100 {strides = array<i32>} : memref<4x16x1xf32, #tpu.memory_space<vmem>>, vector<1x16x1xf32>,
    %c2_56 = arith.constant 2 : index
    %c0_57 = arith.constant 0 : index
    %c0_58 = arith.constant 0 : index
    %101 = vector.load %arg14[%c2_56, %c0_57, %c0_58] : memref<4x16x1xf32, #tpu.memory_space<vmem>>, vector<1x16x1xf32>
    %102 = vector.shape_cast %101 : vector<1x16x1xf32> to vector<16x1xf32>
    %103 = vector.shape_cast %88 : vector<16x1xf32> to vector<1x16x1xf32>
    tpu.vector_store %arg14[%c2_56, %c0_57, %c0_58], %103 {strides = array<i32>} : memref<4x16x1xf32, #tpu.memory_space<vmem>>, vector<1x16x1xf32>,
    %c0_59 = arith.constant 0 : index
    %c64_60 = arith.constant 64 : index
    %104 = vector.load %arg16[%c0_59, %c64_60] : memref<16x128xf32, #tpu.memory_space<vmem>>, vector<16x32xf32>
    %105 = vector.broadcast %90 : vector<16x1xf32> to vector<16x32xf32>
    %106 = arith.mulf %105, %104 : vector<16x32xf32>
    %107 = arith.truncf %93 : vector<16x16xf32> to vector<16x16xbf16>
    %cst_61 = arith.constant dense<0.000000e+00> : vector<16x32xf32>
    %108 = tpu.matmul %107, %80, %cst_61 {dimension_numbers = #tpu.dot_dimension_numbers<[1], [0], [0], [1], [0, 0, 1, 1], [], []>} : vector<16x16xbf16>, vector<16x32xbf16>, vector<16x32xf32> -> vector<16x32xf32>
    %109 = arith.addf %106, %108 : vector<16x32xf32>
    %c0_62 = arith.constant 0 : index
    %c64_63 = arith.constant 64 : index
    %110 = vector.load %arg16[%c0_62, %c64_63] : memref<16x128xf32, #tpu.memory_space<vmem>>, vector<16x32xf32>
    tpu.vector_store %arg16[%c0_62, %c64_63], %109 {strides = array<i32>} : memref<16x128xf32, #tpu.memory_space<vmem>>, vector<16x32xf32>,
    %c0_64 = arith.constant 0 : index
    %c96 = arith.constant 96 : index
    %111 = vector.load %arg12[%c0_64, %c96] : memref<16x128xbf16, #tpu.memory_space<vmem>>, vector<16x32xbf16>
    %112 = vector.extract_strided_slice %9 {offsets = [0, 96], sizes = [16, 32], strides = [1, 1]} : vector<16x128xbf16> to vector<16x32xbf16>
    %113 = vector.extract_strided_slice %11 {offsets = [0, 96], sizes = [16, 32], strides = [1, 1]} : vector<16x128xbf16> to vector<16x32xbf16>
    %cst_65 = arith.constant dense<0.000000e+00> : vector<16x16xf32>
    %114 = tpu.matmul %111, %112, %cst_65 {dimension_numbers = #tpu.dot_dimension_numbers<[1], [1], [0], [0], [0, 0, 1, 0], [], []>} : vector<16x32xbf16>, vector<16x32xbf16>, vector<16x16xf32> -> vector<16x16xf32>
    %c3 = arith.constant 3 : index
    %c0_66 = arith.constant 0 : index
    %c0_67 = arith.constant 0 : index
    %115 = vector.load %arg14[%c3, %c0_66, %c0_67] : memref<4x16x1xf32, #tpu.memory_space<vmem>>, vector<1x16x1xf32>
    %116 = vector.shape_cast %115 : vector<1x16x1xf32> to vector<16x1xf32>
    %c3_68 = arith.constant 3 : index
    %c0_69 = arith.constant 0 : index
    %c0_70 = arith.constant 0 : index
    %117 = vector.load %arg15[%c3_68, %c0_69, %c0_70] : memref<4x16x1xf32, #tpu.memory_space<vmem>>, vector<1x16x1xf32>
    %118 = vector.shape_cast %117 : vector<1x16x1xf32> to vector<16x1xf32>
    %cst_71 = arith.constant dense<0xFF800000> : vector<16xf32>
    %119 = vector.multi_reduction <maximumf>, %114, %cst_71 [1] : vector<16x16xf32> to vector<16xf32>
    %120 = vector.shape_cast %119 : vector<16xf32> to vector<16x1xf32>
    %121 = arith.maximumf %116, %120 : vector<16x1xf32>
    %122 = arith.subf %116, %121 : vector<16x1xf32>
    %123 = math.exp %122 : vector<16x1xf32>
    %124 = vector.broadcast %121 : vector<16x1xf32> to vector<16x16xf32>
    %125 = arith.subf %114, %124 : vector<16x16xf32>
    %126 = math.exp %125 : vector<16x16xf32>
    %127 = arith.mulf %123, %118 : vector<16x1xf32>
    %cst_72 = arith.constant dense<0.000000e+00> : vector<16xf32>
    %128 = vector.multi_reduction <add>, %126, %cst_72 [1] : vector<16x16xf32> to vector<16xf32>
    %129 = vector.shape_cast %128 : vector<16xf32> to vector<16x1xf32>
    %130 = arith.addf %127, %129 : vector<16x1xf32>
    %c3_73 = arith.constant 3 : index
    %c0_74 = arith.constant 0 : index
    %c0_75 = arith.constant 0 : index
    %131 = vector.load %arg15[%c3_73, %c0_74, %c0_75] : memref<4x16x1xf32, #tpu.memory_space<vmem>>, vector<1x16x1xf32>
    %132 = vector.shape_cast %131 : vector<1x16x1xf32> to vector<16x1xf32>
    %133 = vector.shape_cast %130 : vector<16x1xf32> to vector<1x16x1xf32>
    tpu.vector_store %arg15[%c3_73, %c0_74, %c0_75], %133 {strides = array<i32>} : memref<4x16x1xf32, #tpu.memory_space<vmem>>, vector<1x16x1xf32>,
    %c3_76 = arith.constant 3 : index
    %c0_77 = arith.constant 0 : index
    %c0_78 = arith.constant 0 : index
    %134 = vector.load %arg14[%c3_76, %c0_77, %c0_78] : memref<4x16x1xf32, #tpu.memory_space<vmem>>, vector<1x16x1xf32>
    %135 = vector.shape_cast %134 : vector<1x16x1xf32> to vector<16x1xf32>
    %136 = vector.shape_cast %121 : vector<16x1xf32> to vector<1x16x1xf32>
    tpu.vector_store %arg14[%c3_76, %c0_77, %c0_78], %136 {strides = array<i32>} : memref<4x16x1xf32, #tpu.memory_space<vmem>>, vector<1x16x1xf32>,
    %c0_79 = arith.constant 0 : index
    %c96_80 = arith.constant 96 : index
    %137 = vector.load %arg16[%c0_79, %c96_80] : memref<16x128xf32, #tpu.memory_space<vmem>>, vector<16x32xf32>
    %138 = vector.broadcast %123 : vector<16x1xf32> to vector<16x32xf32>
    %139 = arith.mulf %138, %137 : vector<16x32xf32>
    %140 = arith.truncf %126 : vector<16x16xf32> to vector<16x16xbf16>
    %cst_81 = arith.constant dense<0.000000e+00> : vector<16x32xf32>
    %141 = tpu.matmul %140, %113, %cst_81 {dimension_numbers = #tpu.dot_dimension_numbers<[1], [0], [0], [1], [0, 0, 1, 1], [], []>} : vector<16x16xbf16>, vector<16x32xbf16>, vector<16x32xf32> -> vector<16x32xf32>
    %142 = arith.addf %139, %141 : vector<16x32xf32>
    %c0_82 = arith.constant 0 : index
    %c96_83 = arith.constant 96 : index
    %143 = vector.load %arg16[%c0_82, %c96_83] : memref<16x128xf32, #tpu.memory_space<vmem>>, vector<16x32xf32>
    tpu.vector_store %arg16[%c0_82, %c96_83], %142 {strides = array<i32>} : memref<16x128xf32, #tpu.memory_space<vmem>>, vector<16x32xf32>,
    %c1_i32 = arith.constant 1 : i32
    %144 = arith.cmpi eq, %arg2, %c1_i32 : i32
    %145 = arith.extui %144 : i1 to i32
    %c0_i32_84 = arith.constant 0 : i32
    %146 = arith.cmpi ne, %145, %c0_i32_84 : i32
    scf.if %146 {
      %c0_85 = arith.constant 0 : index
      %c0_86 = arith.constant 0 : index
      %c0_87 = arith.constant 0 : index
      %147 = vector.load %arg15[%c0_85, %c0_86, %c0_87] : memref<4x16x1xf32, #tpu.memory_space<vmem>>, vector<1x16x1xf32>
      %148 = vector.shape_cast %147 : vector<1x16x1xf32> to vector<16x1xf32>
      %149 = tpu.reciprocal %148 {approx = true} : vector<16x1xf32> -> vector<16x1xf32>
      %c0_88 = arith.constant 0 : index
      %c0_89 = arith.constant 0 : index
      %150 = vector.load %arg16[%c0_88, %c0_89] : memref<16x128xf32, #tpu.memory_space<vmem>>, vector<16x32xf32>
      %151 = vector.broadcast %149 : vector<16x1xf32> to vector<16x32xf32>
      %152 = arith.mulf %150, %151 : vector<16x32xf32>
      %c0_90 = arith.constant 0 : index
      %c0_91 = arith.constant 0 : index
      %153 = vector.load %arg16[%c0_90, %c0_91] : memref<16x128xf32, #tpu.memory_space<vmem>>, vector<16x32xf32>
      tpu.vector_store %arg16[%c0_90, %c0_91], %152 {strides = array<i32>} : memref<16x128xf32, #tpu.memory_space<vmem>>, vector<16x32xf32>,
      %c1_92 = arith.constant 1 : index
      %c0_93 = arith.constant 0 : index
      %c0_94 = arith.constant 0 : index
      %154 = vector.load %arg15[%c1_92, %c0_93, %c0_94] : memref<4x16x1xf32, #tpu.memory_space<vmem>>, vector<1x16x1xf32>
      %155 = vector.shape_cast %154 : vector<1x16x1xf32> to vector<16x1xf32>
      %156 = tpu.reciprocal %155 {approx = true} : vector<16x1xf32> -> vector<16x1xf32>
      %c0_95 = arith.constant 0 : index
      %c32_96 = arith.constant 32 : index
      %157 = vector.load %arg16[%c0_95, %c32_96] : memref<16x128xf32, #tpu.memory_space<vmem>>, vector<16x32xf32>
      %158 = vector.broadcast %156 : vector<16x1xf32> to vector<16x32xf32>
      %159 = arith.mulf %157, %158 : vector<16x32xf32>
      %c0_97 = arith.constant 0 : index
      %c32_98 = arith.constant 32 : index
      %160 = vector.load %arg16[%c0_97, %c32_98] : memref<16x128xf32, #tpu.memory_space<vmem>>, vector<16x32xf32>
      tpu.vector_store %arg16[%c0_97, %c32_98], %159 {strides = array<i32>} : memref<16x128xf32, #tpu.memory_space<vmem>>, vector<16x32xf32>,
      %c2_99 = arith.constant 2 : index
      %c0_100 = arith.constant 0 : index
      %c0_101 = arith.constant 0 : index
      %161 = vector.load %arg15[%c2_99, %c0_100, %c0_101] : memref<4x16x1xf32, #tpu.memory_space<vmem>>, vector<1x16x1xf32>
      %162 = vector.shape_cast %161 : vector<1x16x1xf32> to vector<16x1xf32>
      %163 = tpu.reciprocal %162 {approx = true} : vector<16x1xf32> -> vector<16x1xf32>
      %c0_102 = arith.constant 0 : index
      %c64_103 = arith.constant 64 : index
      %164 = vector.load %arg16[%c0_102, %c64_103] : memref<16x128xf32, #tpu.memory_space<vmem>>, vector<16x32xf32>
      %165 = vector.broadcast %163 : vector<16x1xf32> to vector<16x32xf32>
      %166 = arith.mulf %164, %165 : vector<16x32xf32>
      %c0_104 = arith.constant 0 : index
      %c64_105 = arith.constant 64 : index
      %167 = vector.load %arg16[%c0_104, %c64_105] : memref<16x128xf32, #tpu.memory_space<vmem>>, vector<16x32xf32>
      tpu.vector_store %arg16[%c0_104, %c64_105], %166 {strides = array<i32>} : memref<16x128xf32, #tpu.memory_space<vmem>>, vector<16x32xf32>,
      %c3_106 = arith.constant 3 : index
      %c0_107 = arith.constant 0 : index
      %c0_108 = arith.constant 0 : index
      %168 = vector.load %arg15[%c3_106, %c0_107, %c0_108] : memref<4x16x1xf32, #tpu.memory_space<vmem>>, vector<1x16x1xf32>
      %169 = vector.shape_cast %168 : vector<1x16x1xf32> to vector<16x1xf32>
      %170 = tpu.reciprocal %169 {approx = true} : vector<16x1xf32> -> vector<16x1xf32>
      %c0_109 = arith.constant 0 : index
      %c96_110 = arith.constant 96 : index
      %171 = vector.load %arg16[%c0_109, %c96_110] : memref<16x128xf32, #tpu.memory_space<vmem>>, vector<16x32xf32>
      %172 = vector.broadcast %170 : vector<16x1xf32> to vector<16x32xf32>
      %173 = arith.mulf %171, %172 : vector<16x32xf32>
      %c0_111 = arith.constant 0 : index
      %c96_112 = arith.constant 96 : index
      %174 = vector.load %arg16[%c0_111, %c96_112] : memref<16x128xf32, #tpu.memory_space<vmem>>, vector<16x32xf32>
      tpu.vector_store %arg16[%c0_111, %c96_112], %173 {strides = array<i32>} : memref<16x128xf32, #tpu.memory_space<vmem>>, vector<16x32xf32>,
      %c0_113 = arith.constant 0 : index
      %c0_114 = arith.constant 0 : index
      %175 = vector.load %arg16[%c0_113, %c0_114] : memref<16x128xf32, #tpu.memory_space<vmem>>, vector<16x128xf32>
      %176 = arith.truncf %175 : vector<16x128xf32> to vector<16x128xbf16>
      %c0_115 = arith.constant 0 : index
      %c0_116 = arith.constant 0 : index
      %177 = vector.load %arg9[%c0_115, %c0_116] : memref<128x128xbf16, #tpu.memory_space<vmem>>, vector<128x128xbf16>
      %cst_117 = arith.constant dense<0.000000e+00> : vector<16x128xf32>
      %178 = tpu.matmul %176, %177, %cst_117 {dimension_numbers = #tpu.dot_dimension_numbers<[1], [0], [0], [1], [0, 0, 1, 1], [], []>} : vector<16x128xbf16>, vector<128x128xbf16>, vector<16x128xf32> -> vector<16x128xf32>
      %c0_118 = arith.constant 0 : index
      %c0_119 = arith.constant 0 : index
      %179 = vector.load %arg10[%c0_118, %c0_119] : memref<1x128xf32, #tpu.memory_space<vmem>>, vector<1x128xf32>
      %180 = vector.broadcast %179 : vector<1x128xf32> to vector<16x128xf32>
      %181 = arith.addf %178, %180 : vector<16x128xf32>
      %c0_120 = arith.constant 0 : index
      %c0_121 = arith.constant 0 : index
      %c0_122 = arith.constant 0 : index
      %182 = vector.load %arg11[%c0_120, %c0_121, %c0_122] : memref<1x16x128xf32, #tpu.memory_space<vmem>>, vector<1x16x128xf32>
      %183 = vector.shape_cast %182 : vector<1x16x128xf32> to vector<16x128xf32>
      %184 = vector.shape_cast %181 : vector<16x128xf32> to vector<1x16x128xf32>
      tpu.vector_store %arg11[%c0_120, %c0_121, %c0_122], %184 {strides = array<i32>} : memref<1x16x128xf32, #tpu.memory_space<vmem>>, vector<1x16x128xf32>,
    } else {
    }
    return
  }
  func.func @transform_0(%arg0: i32, %arg1: i32, %arg2: i32) -> (i32, i32, i32) {
    %c0_i32 = arith.constant 0 : i32
    %c0_i32_0 = arith.constant 0 : i32
    return %arg0, %arg1, %c0_i32 : i32, i32, i32
  }
  func.func @transform_1(%arg0: i32, %arg1: i32, %arg2: i32) -> (i32, i32, i32) {
    %c0_i32 = arith.constant 0 : i32
    %0 = arith.cmpi eq, %arg1, %c0_i32 : i32
    %c0_i32_0 = arith.constant 0 : i32
    %1 = arith.select %0, %arg2, %c0_i32_0 : i32
    %c0_i32_1 = arith.constant 0 : i32
    %c0_i32_2 = arith.constant 0 : i32
    return %arg0, %1, %c0_i32_1 : i32, i32, i32
  }
  func.func @transform_2(%arg0: i32, %arg1: i32, %arg2: i32) -> (i32, i32) {
    %c0_i32 = arith.constant 0 : i32
    %c0_i32_0 = arith.constant 0 : i32
    %c0_i32_1 = arith.constant 0 : i32
    return %c0_i32, %c0_i32_0 : i32, i32
  }
  func.func @transform_3(%arg0: i32, %arg1: i32, %arg2: i32) -> (i32, i32) {
    %c0_i32 = arith.constant 0 : i32
    %c0_i32_0 = arith.constant 0 : i32
    %c0_i32_1 = arith.constant 0 : i32
    return %c0_i32, %c0_i32_0 : i32, i32
  }
  func.func @transform_4(%arg0: i32, %arg1: i32, %arg2: i32) -> (i32, i32) {
    %c0_i32 = arith.constant 0 : i32
    %c0_i32_0 = arith.constant 0 : i32
    %c0_i32_1 = arith.constant 0 : i32
    return %c0_i32, %c0_i32_0 : i32, i32
  }
  func.func @transform_5(%arg0: i32, %arg1: i32, %arg2: i32) -> (i32, i32) {
    %c0_i32 = arith.constant 0 : i32
    %c0_i32_0 = arith.constant 0 : i32
    %c0_i32_1 = arith.constant 0 : i32
    return %c0_i32, %c0_i32_0 : i32, i32
  }
  func.func @transform_6(%arg0: i32, %arg1: i32, %arg2: i32) -> (i32, i32) {
    %c0_i32 = arith.constant 0 : i32
    %c0_i32_0 = arith.constant 0 : i32
    %c0_i32_1 = arith.constant 0 : i32
    return %c0_i32, %c0_i32_0 : i32, i32
  }
  func.func @transform_7(%arg0: i32, %arg1: i32, %arg2: i32) -> (i32, i32) {
    %c0_i32 = arith.constant 0 : i32
    %c0_i32_0 = arith.constant 0 : i32
    %c0_i32_1 = arith.constant 0 : i32
    return %c0_i32, %c0_i32_0 : i32, i32
  }
  func.func @transform_8(%arg0: i32, %arg1: i32, %arg2: i32) -> (i32, i32, i32) {
    %c0_i32 = arith.constant 0 : i32
    %c0_i32_0 = arith.constant 0 : i32
    return %arg0, %arg1, %c0_i32 : i32, i32, i32
  }
}

</mosaic_0001>

<llo_original>
// kernel: tpu_custom_call.1
$region0: #{tpu_custom_call.1}
  #allocation0 [shape = 'u32[]', space=smem, size = 0x4, offset = 0x4, fixed_abs, tag = 'smem constant byte address 0x4 - core index']
  #allocation1 [shape = 'u32[144,128]{1,0:T(1,128)}', space=vmem, size = 0x12000, scoped, tag = 'internal scratch']
  #allocation2 [shape = 'bf16[16,128]{1,0:T(8,128)(2,1)}', space=vmem, size = 0x1000, scoped, tag = 'scratch operand']
  #allocation3 [shape = 'bf16[32,256]{1,0:T(8,128)(2,1)}', space=vmem, size = 0x4000, scoped, tag = 'scratch operand']
  #allocation4 [shape = 'f32[4,16,1]{2,1,0:T(8,128)}', space=vmem, size = 0x8000, scoped, tag = 'scratch operand']
  #allocation5 [shape = 'f32[4,16,1]{2,1,0:T(8,128)}', space=vmem, size = 0x8000, scoped, tag = 'scratch operand']
  #allocation6 [shape = 'f32[16,128]{1,0:T(8,128)}', space=vmem, size = 0x2000, scoped, tag = 'scratch operand']
  %s0 = inlined_call_operand.hbm [shape: f32[2,32,128], index: 0, kind: input, shape index: {}]
  %s1 = inlined_call_operand.hbm [shape: f32[2,32,128], index: 1, kind: input, shape index: {}]
  %s2 = inlined_call_operand.hbm [shape: bf16[128,128], index: 2, kind: input, shape index: {}]
  %s3 = inlined_call_operand.vmem [shape: f32[1,128], index: 3, kind: input, shape index: {}]
  %s4 = inlined_call_operand.hbm [shape: bf16[128,256], index: 4, kind: input, shape index: {}]
  %s5 = inlined_call_operand.vmem [shape: f32[1,256], index: 5, kind: input, shape index: {}]
  %s6 = inlined_call_operand.hbm [shape: bf16[128,128], index: 6, kind: input, shape index: {}]
  %s7 = inlined_call_operand.vmem [shape: f32[1,128], index: 7, kind: input, shape index: {}]
  %s8 = inlined_call_operand.hbm [shape: f32[2,32,128], index: 8, kind: output, shape index: {}]
  %s9 = sld [smem:[#allocation0]]
  $region97: #{tpu_custom_call.1} parent=0
    _
  %s11 = ssub.s32 1, %s9
  %s12 = scalar_select 0, %s11, %s9
  $region1: #{tpu_custom_call.1} parent=0
    #allocation7 [shape = 'u8[16384]{0}', space=vmem, size = 0x4000, scoped, tag = 'input window, operand 0']
    #allocation8 [shape = 's32[2]{0}', space=sflag, size = 0x8, scoped, tag = 'scoped memory for tpu_custom_call.1']
    #allocation9 [shape = 's32[2]{0}', space=sflag, size = 0x8, scoped, tag = 'scoped memory for tpu_custom_call.1']
    #allocation10 [shape = 'u8[16384]{0}', space=vmem, size = 0x4000, scoped, tag = 'input window, operand 1']
    #allocation11 [shape = 's32[2]{0}', space=sflag, size = 0x8, scoped, tag = 'scoped memory for tpu_custom_call.1']
    #allocation12 [shape = 'u8[32768]{0}', space=vmem, size = 0x8000, scoped, tag = 'input window, operand 2, single buffered']
    #allocation13 [shape = 'u8[65536]{0}', space=vmem, size = 0x10000, scoped, tag = 'input window, operand 4, single buffered']
    #allocation14 [shape = 's32[1]{0}', space=sflag, size = 0x4, scoped, tag = 'scoped memory for tpu_custom_call.1']
    #allocation15 [shape = 'u8[32768]{0}', space=vmem, size = 0x8000, scoped, tag = 'input window, operand 6, single buffered']
    #allocation16 [shape = 'u8[16384]{0}', space=vmem, size = 0x4000, scoped, tag = 'output window, operand 0']
    %13 = vsyncpa [#allocation8], 0
    %s14 = scalar_lea.sflag [#allocation8], 1
    %15 = vsyncpa %s14, 0
    %16 = vsyncpa [#allocation11], 0
    %s17 = scalar_lea.sflag [#allocation11], 1
    %18 = vsyncpa %s17, 0
    %19 = vsyncpa [#allocation14], 0
    %20 = vsyncpa [#allocation9], 0
    %s21 = scalar_lea.sflag [#allocation9], 1
    %22 = vsyncpa %s21, 0
    loop: start=0, step=1, limit=10
    $region2: #{tpu_custom_call.1} parent=1 // loop_pre_header
      _
    $region3: #{tpu_custom_call.1} parent=1 // loop_header
      %s24 = sphi 0, %s28
      %p25 = scmp.ge.s32.totalorder %s24, 10
      %s31 = sphi 0, %s50
      %s32 = sphi 0, %s46
      %s33 = sphi 0, %s42
      %s34 = sphi 0, %s31
      %s35 = sphi 0, %s32
      %s36 = sphi 0, %s33
      %s37 = sphi 0, %s34
      %s38 = sphi 0, %s35
      %s39 = sphi 0, %s36
      %s55 = sphi 0, %s57
      %s58 = sphi 0, %s55
      %s59 = sphi 0, %s58
      %s75 = sphi 0, %s59
      %s87 = sphi 0, %s89
      %s90 = sphi 0, %s87
      %s91 = sphi 0, %s90
      %s107 = sphi 0, %s91
      %s111 = sphi 0, %s111
      %s113 = sphi 0, %s111
      %s114 = sphi 0, %s113
      %s128 = sphi 0, %s114
      %s132 = sphi 0, %s132
      %s134 = sphi 0, %s132
      %s135 = sphi 0, %s134
      %s149 = sphi 0, %s135
      %s153 = sphi 0, %s153
      %s155 = sphi 0, %s153
      %s156 = sphi 0, %s155
      %s170 = sphi 0, %s156
      %s174 = sphi 0, %s174
      %s176 = sphi 0, %s174
      %s177 = sphi 0, %s176
      %s191 = sphi 0, %s177
      %s195 = sphi 0, %s195
      %s197 = sphi 0, %s195
      %s198 = sphi 0, %s197
      %s212 = sphi 0, %s198
      %s216 = sphi 0, %s216
      %s218 = sphi 0, %s216
      %s219 = sphi 0, %s218
      %s233 = sphi 0, %s219
      %s241 = sphi 0, %s243
      %s244 = sphi 0, %s241
      %s245 = sphi 0, %s244
      %s261 = sphi 0, %s245
    $region4: #{tpu_custom_call.1} parent=1 // loop_header_branch
      %27 = sbr.rel (%p25) target = $region8
    $region5: #{tpu_custom_call.1} parent=1 // loop_body
      %s29 = ssub.s32 %s24, 1
      %s30 = ssub.s32 %s24, 2
      %s40 = sadd.s32 1, %s33
      %p41 = scmp.ge.s32.totalorder %s40, 2
      %s42 = scalar_select %p41, 0, %s40
      %s43 = sadd.s32 1, %s32
      %s44 = scalar_select %p41, %s43, %s32
      %p45 = scmp.ge.s32.totalorder %s44, 2
      %s46 = scalar_select %p45, 0, %s44
      %s47 = sadd.s32 1, %s31
      %s48 = scalar_select %p45, %s47, %s31
      %p49 = scmp.ge.s32.totalorder %s48, 2
      %s50 = scalar_select %p49, 0, %s48
      %s51 = ssub.s32 %s31, %s50
      %s52 = ssub.s32 %s32, %s46
      %s53 = sor.u32 %s51, %s52
      %p54 = scmp.eq.s32.totalorder %s53, 0
      %s56 = sadd.s32 %s55, 1
      %s57 = scalar_select %p54, %s55, %s56
      %p60 = pneg %p54
      %p61 = scmp.eq.s32.totalorder %s24, 7
      %p62 = por %p60, %p61
      %p63 = scmp.ne.s32.totalorder %s55, %s58
      %p64 = scmp.eq.s32.totalorder %s24, 0
      %p65 = por %p63, %p64
      %p66 = scmp.ne.s32.totalorder %s55, %s58
      %p67 = scmp.eq.s32.totalorder %s29, 7
      %p68 = por %p66, %p67
      %p69 = scmp.ne.s32.totalorder %s58, %s59
      %p70 = scmp.eq.s32.totalorder %s29, 0
      %p71 = por %p69, %p70
      %p72 = scmp.ne.s32.totalorder %s58, %s59
      %p73 = scmp.eq.s32.totalorder %s30, 7
      %p74 = por %p72, %p73
      %p76 = scmp.ne.s32.totalorder %s59, %s75
      %p77 = scmp.eq.s32.totalorder %s30, 0
      %p78 = por %p76, %p77
      %p79 = scmp.eq.s32.totalorder %s32, 0
      %s80 = scalar_select %p79, %s33, 0
      %p81 = scmp.eq.s32.totalorder %s46, 0
      %s82 = scalar_select %p81, %s42, 0
      %s83 = ssub.s32 %s31, %s50
      %s84 = ssub.s32 %s80, %s82
      %s85 = sor.u32 %s83, %s84
      %p86 = scmp.eq.s32.totalorder %s85, 0
      %s88 = sadd.s32 %s87, 1
      %s89 = scalar_select %p86, %s87, %s88
      %p92 = pneg %p86
      %p93 = scmp.eq.s32.totalorder %s24, 7
      %p94 = por %p92, %p93
      %p95 = scmp.ne.s32.totalorder %s87, %s90
      %p96 = scmp.eq.s32.totalorder %s24, 0
      %p97 = por %p95, %p96
      %p98 = scmp.ne.s32.totalorder %s87, %s90
      %p99 = scmp.eq.s32.totalorder %s29, 7
      %p100 = por %p98, %p99
      %p101 = scmp.ne.s32.totalorder %s90, %s91
      %p102 = scmp.eq.s32.totalorder %s29, 0
      %p103 = por %p101, %p102
      %p104 = scmp.ne.s32.totalorder %s90, %s91
      %p105 = scmp.eq.s32.totalorder %s30, 7
      %p106 = por %p104, %p105
      %p108 = scmp.ne.s32.totalorder %s91, %s107
      %p109 = scmp.eq.s32.totalorder %s30, 0
      %p110 = por %p108, %p109
      %s112 = sadd.s32 %s111, 1
      %p115 = scmp.eq.s32.totalorder %s24, 7
      %p116 = scmp.ne.s32.totalorder %s111, %s113
      %p117 = scmp.eq.s32.totalorder %s24, 0
      %p118 = por %p116, %p117
      %p119 = scmp.ne.s32.totalorder %s111, %s113
      %p120 = scmp.eq.s32.totalorder %s29, 7
      %p121 = por %p119, %p120
      %p122 = scmp.ne.s32.totalorder %s113, %s114
      %p123 = scmp.eq.s32.totalorder %s29, 0
      %p124 = por %p122, %p123
      %p125 = scmp.ne.s32.totalorder %s113, %s114
      %p126 = scmp.eq.s32.totalorder %s30, 7
      %p127 = por %p125, %p126
      %p129 = scmp.ne.s32.totalorder %s114, %s128
      %p130 = scmp.eq.s32.totalorder %s30, 0
      %p131 = por %p129, %p130
      %s133 = sadd.s32 %s132, 1
      %p136 = scmp.eq.s32.totalorder %s24, 7
      %p137 = scmp.ne.s32.totalorder %s132, %s134
      %p138 = scmp.eq.s32.totalorder %s24, 0
      %p139 = por %p137, %p138
      %p140 = scmp.ne.s32.totalorder %s132, %s134
      %p141 = scmp.eq.s32.totalorder %s29, 7
      %p142 = por %p140, %p141
      %p143 = scmp.ne.s32.totalorder %s134, %s135
      %p144 = scmp.eq.s32.totalorder %s29, 0
      %p145 = por %p143, %p144
      %p146 = scmp.ne.s32.totalorder %s134, %s135
      %p147 = scmp.eq.s32.totalorder %s30, 7
      %p148 = por %p146, %p147
      %p150 = scmp.ne.s32.totalorder %s135, %s149
      %p151 = scmp.eq.s32.totalorder %s30, 0
      %p152 = por %p150, %p151
      %s154 = sadd.s32 %s153, 1
      %p157 = scmp.eq.s32.totalorder %s24, 7
      %p158 = scmp.ne.s32.totalorder %s153, %s155
      %p159 = scmp.eq.s32.totalorder %s24, 0
      %p160 = por %p158, %p159
      %p161 = scmp.ne.s32.totalorder %s153, %s155
      %p162 = scmp.eq.s32.totalorder %s29, 7
      %p163 = por %p161, %p162
      %p164 = scmp.ne.s32.totalorder %s155, %s156
      %p165 = scmp.eq.s32.totalorder %s29, 0
      %p166 = por %p164, %p165
      %p167 = scmp.ne.s32.totalorder %s155, %s156
      %p168 = scmp.eq.s32.totalorder %s30, 7
      %p169 = por %p167, %p168
      %p171 = scmp.ne.s32.totalorder %s156, %s170
      %p172 = scmp.eq.s32.totalorder %s30, 0
      %p173 = por %p171, %p172
      %s175 = sadd.s32 %s174, 1
      %p178 = scmp.eq.s32.totalorder %s24, 7
      %p179 = scmp.ne.s32.totalorder %s174, %s176
      %p180 = scmp.eq.s32.totalorder %s24, 0
      %p181 = por %p179, %p180
      %p182 = scmp.ne.s32.totalorder %s174, %s176
      %p183 = scmp.eq.s32.totalorder %s29, 7
      %p184 = por %p182, %p183
      %p185 = scmp.ne.s32.totalorder %s176, %s177
      %p186 = scmp.eq.s32.totalorder %s29, 0
      %p187 = por %p185, %p186
      %p188 = scmp.ne.s32.totalorder %s176, %s177
      %p189 = scmp.eq.s32.totalorder %s30, 7
      %p190 = por %p188, %p189
      %p192 = scmp.ne.s32.totalorder %s177, %s191
      %p193 = scmp.eq.s32.totalorder %s30, 0
      %p194 = por %p192, %p193
      %s196 = sadd.s32 %s195, 1
      %p199 = scmp.eq.s32.totalorder %s24, 7
      %p200 = scmp.ne.s32.totalorder %s195, %s197
      %p201 = scmp.eq.s32.totalorder %s24, 0
      %p202 = por %p200, %p201
      %p203 = scmp.ne.s32.totalorder %s195, %s197
      %p204 = scmp.eq.s32.totalorder %s29, 7
      %p205 = por %p203, %p204
      %p206 = scmp.ne.s32.totalorder %s197, %s198
      %p207 = scmp.eq.s32.totalorder %s29, 0
      %p208 = por %p206, %p207
      %p209 = scmp.ne.s32.totalorder %s197, %s198
      %p210 = scmp.eq.s32.totalorder %s30, 7
      %p211 = por %p209, %p210
      %p213 = scmp.ne.s32.totalorder %s198, %s212
      %p214 = scmp.eq.s32.totalorder %s30, 0
      %p215 = por %p213, %p214
      %s217 = sadd.s32 %s216, 1
      %p220 = scmp.eq.s32.totalorder %s24, 7
      %p221 = scmp.ne.s32.totalorder %s216, %s218
      %p222 = scmp.eq.s32.totalorder %s24, 0
      %p223 = por %p221, %p222
      %p224 = scmp.ne.s32.totalorder %s216, %s218
      %p225 = scmp.eq.s32.totalorder %s29, 7
      %p226 = por %p224, %p225
      %p227 = scmp.ne.s32.totalorder %s218, %s219
      %p228 = scmp.eq.s32.totalorder %s29, 0
      %p229 = por %p227, %p228
      %p230 = scmp.ne.s32.totalorder %s218, %s219
      %p231 = scmp.eq.s32.totalorder %s30, 7
      %p232 = por %p230, %p231
      %p234 = scmp.ne.s32.totalorder %s219, %s233
      %p235 = scmp.eq.s32.totalorder %s30, 0
      %p236 = por %p234, %p235
      %s237 = ssub.s32 %s31, %s50
      %s238 = ssub.s32 %s32, %s46
      %s239 = sor.u32 %s237, %s238
      %p240 = scmp.eq.s32.totalorder %s239, 0
      %s242 = sadd.s32 %s241, 1
      %s243 = scalar_select %p240, %s241, %s242
      %p246 = pneg %p240
      %p247 = scmp.eq.s32.totalorder %s24, 7
      %p248 = por %p246, %p247
      %p249 = scmp.ne.s32.totalorder %s241, %s244
      %p250 = scmp.eq.s32.totalorder %s24, 0
      %p251 = por %p249, %p250
      %p252 = scmp.ne.s32.totalorder %s241, %s244
      %p253 = scmp.eq.s32.totalorder %s29, 7
      %p254 = por %p252, %p253
      %p255 = scmp.ne.s32.totalorder %s244, %s245
      %p256 = scmp.eq.s32.totalorder %s29, 0
      %p257 = por %p255, %p256
      %p258 = scmp.ne.s32.totalorder %s244, %s245
      %p259 = scmp.eq.s32.totalorder %s30, 7
      %p260 = por %p258, %p259
      %p262 = scmp.ne.s32.totalorder %s245, %s261
      %p263 = scmp.eq.s32.totalorder %s30, 0
      %p264 = por %p262, %p263
      %p265 = scmp.le.s32.totalorder 1, %s24
      %p266 = scmp.lt.s32.totalorder %s24, 9
      %p267 = pnand %p265, %p266
      %p268 = pneg %p267
      // Predicated region
      $region9: #{tpu_custom_call.1} parent=5 // pred_check
        _
      $region10: #{tpu_custom_call.1} parent=5 // pred_check_branch
        %270 = sbr.rel (%p267) target = $region12
      $region11: #{tpu_custom_call.1} parent=5 // pred_region
        %s271 = ssub.s32 %s24, 1
        // Predicated region
        $region13: #{tpu_custom_call.1} parent=11 // pred_check
          %p272 = pneg %p124
        $region14: #{tpu_custom_call.1} parent=11 // pred_check_branch
          %274 = sbr.rel (%p272) target = $region16
        $region15: #{tpu_custom_call.1} parent=11 // pred_region
          %s276 = ssub.s32 1024, 1024
          %277 = vsyncadd [#allocation11], %s276
          %s278 = sshll.u32 [#allocation12], 4
          %s279 = int_to_ptr.vmem [resolvable:$true] %s278
          %284 = dma.hbm_to_vmem [thread:$0]  %s2, 1024, %s279, [#allocation11], 64, 64, 4
        $region16: #{tpu_custom_call.1} parent=11 // pred_fallthru
          _
        // Predicated region
        $region17: #{tpu_custom_call.1} parent=11 // pred_check
          %p285 = pneg %p145
        $region18: #{tpu_custom_call.1} parent=11 // pred_check_branch
          %287 = sbr.rel (%p285) target = $region20
        $region19: #{tpu_custom_call.1} parent=11 // pred_region
          _
        $region20: #{tpu_custom_call.1} parent=11 // pred_fallthru
          _
        // Predicated region
        $region21: #{tpu_custom_call.1} parent=11 // pred_check
          %p288 = pneg %p166
        $region22: #{tpu_custom_call.1} parent=11 // pred_check_branch
          %290 = sbr.rel (%p288) target = $region24
        $region23: #{tpu_custom_call.1} parent=11 // pred_region
          %s292 = ssub.s32 2048, 2048
          %293 = vsyncadd [#allocation14], %s292
          %s294 = sshll.u32 [#allocation13], 4
          %s295 = int_to_ptr.vmem [resolvable:$true] %s294
          %300 = dma.hbm_to_vmem [thread:$0]  %s4, 2048, %s295, [#allocation14], 128, 128, 8
        $region24: #{tpu_custom_call.1} parent=11 // pred_fallthru
          _
        // Predicated region
        $region25: #{tpu_custom_call.1} parent=11 // pred_check
          %p301 = pneg %p187
        $region26: #{tpu_custom_call.1} parent=11 // pred_check_branch
          %303 = sbr.rel (%p301) target = $region28
        $region27: #{tpu_custom_call.1} parent=11 // pred_region
          _
        $region28: #{tpu_custom_call.1} parent=11 // pred_fallthru
          _
        // Predicated region
        $region29: #{tpu_custom_call.1} parent=11 // pred_check
          %p304 = pneg %p208
        $region30: #{tpu_custom_call.1} parent=11 // pred_check_branch
          %306 = sbr.rel (%p304) target = $region32
        $region31: #{tpu_custom_call.1} parent=11 // pred_region
          %s308 = ssub.s32 1024, 1024
          %309 = vsyncadd [#allocation14], %s308
          %s310 = sshll.u32 [#allocation15], 4
          %s311 = int_to_ptr.vmem [resolvable:$true] %s310
          %316 = dma.hbm_to_vmem [thread:$0]  %s6, 1024, %s311, [#allocation14], 64, 64, 4
        $region32: #{tpu_custom_call.1} parent=11 // pred_fallthru
          _
        // Predicated region
        $region33: #{tpu_custom_call.1} parent=11 // pred_check
          %p317 = pneg %p229
        $region34: #{tpu_custom_call.1} parent=11 // pred_check_branch
          %319 = sbr.rel (%p317) target = $region36
        $region35: #{tpu_custom_call.1} parent=11 // pred_region
          _
        $region36: #{tpu_custom_call.1} parent=11 // pred_fallthru
          _
      $region12: #{tpu_custom_call.1} parent=5 // pred_fallthru
        _
      %p320 = scmp.lt.s32.totalorder %s24, 8
      // Predicated region
      $region37: #{tpu_custom_call.1} parent=5 // pred_check
        %p321 = pneg %p320
      $region38: #{tpu_custom_call.1} parent=5 // pred_check_branch
        %323 = sbr.rel (%p321) target = $region40
      $region39: #{tpu_custom_call.1} parent=5 // pred_region
        // Predicated region
        $region41: #{tpu_custom_call.1} parent=39 // pred_check
          %p324 = pneg %p65
        $region42: #{tpu_custom_call.1} parent=39 // pred_check_branch
          %326 = sbr.rel (%p324) target = $region44
        $region43: #{tpu_custom_call.1} parent=39 // pred_region
          %s327 = sand.u32 %s55, 1
          %s328 = scalar_lea.sflag [#allocation8], %s327
          %s329 = sand.u32 %s55, 1
          %s330 = smul.addr %s329, 16
          %s331 = scalar_lea.vmem [#allocation7], %s330
          %s332 = smul.u32 2, %s32
          %s334 = ssub.s32 256, 256
          %335 = vsyncadd %s328, %s334
          %s336 = smul.addr %s31, 4
          %s337 = sadd.s32 %s332, %s336
          %s338 = smul.addr %s337, 128
          %s339 = scalar_lea.hbm %s0, %s338
          %s340 = sshll.u32 %s331, 4
          %s341 = int_to_ptr.vmem [resolvable:$true] %s340
          %346 = dma.hbm_to_vmem [thread:$0]  %s339, 256, %s341, %s328, 128, 128, 8
        $region44: #{tpu_custom_call.1} parent=39 // pred_fallthru
          _
        // Predicated region
        $region45: #{tpu_custom_call.1} parent=39 // pred_check
          %p347 = pneg %p97
        $region46: #{tpu_custom_call.1} parent=39 // pred_check_branch
          %349 = sbr.rel (%p347) target = $region48
        $region47: #{tpu_custom_call.1} parent=39 // pred_region
          %s350 = sand.u32 %s24, 1
          %s351 = scalar_lea.sflag [#allocation11], %s350
          %s352 = sand.u32 %s87, 1
          %s353 = smul.addr %s352, 16
          %s354 = scalar_lea.vmem [#allocation10], %s353
          %p355 = scmp.eq.s32.totalorder %s32, 0
          %s356 = scalar_select %p355, %s33, 0
          %s357 = smul.u32 2, %s356
          %s359 = ssub.s32 256, 256
          %360 = vsyncadd %s351, %s359
          %s361 = smul.addr %s31, 4
          %s362 = sadd.s32 %s357, %s361
          %s363 = smul.addr %s362, 128
          %s364 = scalar_lea.hbm %s1, %s363
          %s365 = sshll.u32 %s354, 4
          %s366 = int_to_ptr.vmem [resolvable:$true] %s365
          %371 = dma.hbm_to_vmem [thread:$0]  %s364, 256, %s366, %s351, 128, 128, 8
        $region48: #{tpu_custom_call.1} parent=39 // pred_fallthru
          _
      $region40: #{tpu_custom_call.1} parent=5 // pred_fallthru
        _
      %p372 = scmp.le.s32.totalorder 1, %s24
      %p373 = scmp.lt.s32.totalorder %s24, 9
      %p374 = pnand %p372, %p373
      %p375 = pneg %p374
      // Predicated region
      $region49: #{tpu_custom_call.1} parent=5 // pred_check
        _
      $region50: #{tpu_custom_call.1} parent=5 // pred_check_branch
        %377 = sbr.rel (%p374) target = $region52
      $region51: #{tpu_custom_call.1} parent=5 // pred_region
        %s378 = ssub.s32 %s24, 1
        %s379 = sand.u32 %s58, 1
        %s380 = scalar_lea.sflag [#allocation8], %s379
        %s381 = sand.u32 %s58, 1
        %s382 = smul.addr %s381, 16
        %s383 = scalar_lea.vmem [#allocation7], %s382
        // Predicated region
        $region53: #{tpu_custom_call.1} parent=51 // pred_check
          %p384 = pneg %p71
        $region54: #{tpu_custom_call.1} parent=51 // pred_check_branch
          %386 = sbr.rel (%p384) target = $region56
        $region55: #{tpu_custom_call.1} parent=51 // pred_region
          %387 = dma.done %s380, 256
        $region56: #{tpu_custom_call.1} parent=51 // pred_fallthru
          _
        %s388 = sand.u32 %s29, 1
        %s389 = scalar_lea.sflag [#allocation11], %s388
        %s390 = sand.u32 %s90, 1
        %s391 = smul.addr %s390, 16
        %s392 = scalar_lea.vmem [#allocation10], %s391
        // Predicated region
        $region57: #{tpu_custom_call.1} parent=51 // pred_check
          %p393 = pneg %p103
        $region58: #{tpu_custom_call.1} parent=51 // pred_check_branch
          %395 = sbr.rel (%p393) target = $region60
        $region59: #{tpu_custom_call.1} parent=51 // pred_region
          %396 = dma.done %s389, 256
        $region60: #{tpu_custom_call.1} parent=51 // pred_fallthru
          _
        // Predicated region
        $region61: #{tpu_custom_call.1} parent=51 // pred_check
          %p397 = pneg %p124
        $region62: #{tpu_custom_call.1} parent=51 // pred_check_branch
          %399 = sbr.rel (%p397) target = $region64
        $region63: #{tpu_custom_call.1} parent=51 // pred_region
          %400 = dma.done [#allocation11], 1024
        $region64: #{tpu_custom_call.1} parent=51 // pred_fallthru
          _
        // Predicated region
        $region65: #{tpu_custom_call.1} parent=51 // pred_check
          %p401 = pneg %p166
        $region66: #{tpu_custom_call.1} parent=51 // pred_check_branch
          %403 = sbr.rel (%p401) target = $region68
        $region67: #{tpu_custom_call.1} parent=51 // pred_region
          %404 = dma.done [#allocation14], 2048
        $region68: #{tpu_custom_call.1} parent=51 // pred_fallthru
          _
        // Predicated region
        $region69: #{tpu_custom_call.1} parent=51 // pred_check
          %p405 = pneg %p208
        $region70: #{tpu_custom_call.1} parent=51 // pred_check_branch
          %407 = sbr.rel (%p405) target = $region72
        $region71: #{tpu_custom_call.1} parent=51 // pred_region
          %408 = dma.done [#allocation14], 1024
        $region72: #{tpu_custom_call.1} parent=51 // pred_fallthru
          _
        %s409 = sand.u32 %s58, 1
        %s410 = scalar_lea.sflag [#allocation8], %s409
        %s411 = sand.u32 %s58, 1
        %s412 = smul.addr %s411, 16
        %s413 = scalar_lea.vmem [#allocation7], %s412
        %p414 = pneg %p71
        %p415 = pneg %p68
        %s416 = sand.u32 %s29, 1
        %s417 = scalar_lea.sflag [#allocation11], %s416
        %s418 = sand.u32 %s90, 1
        %s419 = smul.addr %s418, 16
        %s420 = scalar_lea.vmem [#allocation10], %s419
        %p421 = pneg %p103
        %p422 = pneg %p100
        %p423 = pneg %p124
        %p424 = pneg %p121
        %p425 = pneg %p145
        %p426 = pneg %p142
        %p427 = pneg %p166
        %p428 = pneg %p163
        %p429 = pneg %p187
        %p430 = pneg %p184
        %p431 = pneg %p208
        %p432 = pneg %p205
        %p433 = pneg %p229
        %p434 = pneg %p226
        %p435 = pneg %p257
        %p436 = pneg %p254
        %s437 = sand.u32 %s244, 1
        %s438 = scalar_lea.sflag [#allocation9], %s437
        %s439 = sand.u32 %s244, 1
        %s440 = smul.addr %s439, 16
        %s441 = scalar_lea.vmem [#allocation16], %s440
        %s442 = smul.u32 2, %s35
        %p443 = scmp.eq.s32.totalorder %s35, 0
        %s444 = scalar_select %p443, %s36, 0
        %s445 = smul.u32 2, %s444
        %s446 = smul.u32 2, %s35
        %p448 = scmp.eq.s32.totalorder %s36, 0
        // Predicated region
        $region73: #{tpu_custom_call.1} parent=51 // pred_check
          %p449 = pneg %p448
        $region74: #{tpu_custom_call.1} parent=51 // pred_check_branch
          %451 = sbr.rel (%p449) target = $region76
        $region75: #{tpu_custom_call.1} parent=51 // pred_region
          %v452 = vld [vmem:[%s383] sm:$0xff]
          %v453 = vld [vmem:[%s383 + $0x8] sm:$0xff]
          %v454 = vpack.c.bf16 %v453, %v452
          %v455 = vld [vmem:[#allocation12] sm:$0xf]
          %v456 = vld [vmem:[#allocation12 + $0x4] sm:$0xf]
          %v457 = vld [vmem:[#allocation12 + $0x8] sm:$0xf]
          %v458 = vld [vmem:[#allocation12 + $0xc] sm:$0xf]
          %v459 = vld [vmem:[#allocation12 + $0x10] sm:$0xf]
          %v460 = vld [vmem:[#allocation12 + $0x14] sm:$0xf]
          %v461 = vld [vmem:[#allocation12 + $0x18] sm:$0xf]
          %v462 = vld [vmem:[#allocation12 + $0x1c] sm:$0xf]
          %v463 = vld [vmem:[#allocation12 + $0x20] sm:$0xf]
          %v464 = vld [vmem:[#allocation12 + $0x24] sm:$0xf]
          %v465 = vld [vmem:[#allocation12 + $0x28] sm:$0xf]
          %v466 = vld [vmem:[#allocation12 + $0x2c] sm:$0xf]
          %v467 = vld [vmem:[#allocation12 + $0x30] sm:$0xf]
          %v468 = vld [vmem:[#allocation12 + $0x34] sm:$0xf]
          %v469 = vld [vmem:[#allocation12 + $0x38] sm:$0xf]
          %v470 = vld [vmem:[#allocation12 + $0x3c] sm:$0xf]
          %v471 = vld [vmem:[%s3] sm:$0x1]
          %v473 = vlaneseq
          %v474 = vshrl.u32 %v473, 7
          %v475 = vsub.s32 0, %v474
          %v476 = vrot.slane %v471, %v475
          %v494 = vunpack.c.l.b16 %v455
          %v495 = vunpack.c.l.b16 %v456
          %v496 = vunpack.c.l.b16 %v457
          %v497 = vunpack.c.l.b16 %v458
          %v498 = vunpack.c.l.b16 %v459
          %v499 = vunpack.c.l.b16 %v460
          %v500 = vunpack.c.l.b16 %v461
          %v501 = vunpack.c.l.b16 %v462
          %v502 = vunpack.c.l.b16 %v463
          %v503 = vunpack.c.l.b16 %v464
          %v504 = vunpack.c.l.b16 %v465
          %v505 = vunpack.c.l.b16 %v466
          %v506 = vunpack.c.l.b16 %v467
          %v507 = vunpack.c.l.b16 %v468
          %v508 = vunpack.c.l.b16 %v469
          %v509 = vunpack.c.l.b16 %v470
          %v510 = vpack.c.b16 %v495, %v494
          %v511 = vpack.c.b16 %v497, %v496
          %v512 = vpack.c.b16 %v499, %v498
          %v513 = vpack.c.b16 %v501, %v500
          %v514 = vpack.c.b16 %v503, %v502
          %v515 = vpack.c.b16 %v505, %v504
          %v516 = vpack.c.b16 %v507, %v506
          %v517 = vpack.c.b16 %v509, %v508
          %526 = vmatprep.subr.bf16.mxu0 0
          %527 = vmatpush1.bf16.msra.mxu0 %v517
          %528 = vmatprep.subr.bf16.mxu0 0
          %529 = vmatpush1.bf16.msra.mxu0 %v516
          %530 = vmatprep.subr.bf16.mxu0 0
          %531 = vmatpush1.bf16.msra.mxu0 %v515
          %532 = vmatprep.subr.bf16.mxu0 0
          %533 = vmatpush1.bf16.msra.mxu0 %v514
          %534 = vmatprep.subr.bf16.mxu0 0
          %535 = vmatpush1.bf16.msra.mxu0 %v513
          %536 = vmatprep.subr.bf16.mxu0 0
          %537 = vmatpush1.bf16.msra.mxu0 %v512
          %538 = vmatprep.subr.bf16.mxu0 0
          %539 = vmatpush1.bf16.msra.mxu0 %v511
          %540 = vmatprep.subr.bf16.mxu0 0
          %541 = vmatpush1.bf16.msra.mxu0 %v510
          %542 = vmatprep.subr.bf16.mxu0 0
          %543 = vmatpush2.bf16.msra.mxu0 0
          %544 = vmatprep.subr.bf16.mxu0 0
          %545 = vmatpush2.bf16.msra.mxu0 0
          %546 = vmatprep.subr.bf16.mxu0 0
          %547 = vmatpush2.bf16.msra.mxu0 0
          %548 = vmatprep.subr.bf16.mxu0 0
          %549 = vmatpush2.bf16.msra.mxu0 0
          %550 = vmatprep.subr.bf16.mxu0 0
          %551 = vmatpush2.bf16.msra.mxu0 0
          %552 = vmatprep.subr.bf16.mxu0 0
          %553 = vmatpush2.bf16.msra.mxu0 0
          %554 = vmatprep.subr.bf16.mxu0 0
          %555 = vmatpush2.bf16.msra.mxu0 0
          %556 = vmatprep.subr.bf16.mxu0 0
          %557 = vmatpush2.bf16.msra.mxu0 0
          %558 = vmatprep.mubr.bf16.mxu0 0
          %559 = vmatmul.mubr.bf16.gmra.mxu0 %v454
          %v560 = vpop.f32.mrf.mxu0
          %v561 = vadd.f32 %v476, %v560
          %v562 = vpop.f32.mrf.mxu0
          %v563 = vpop.f32.mrf.mxu0
          %v564 = vadd.f32 %v476, %v563
          %v565 = vpop.f32.mrf.mxu0
          %566 = vdwg.mxu0
          %v567 = vmul.f32 %v561, 0.17677669
          %v568 = vmul.f32 %v564, 0.17677669
          %v569 = vpack.c.bf16 %v568, %v567
          %v571 = vunpack.c.l.b16 %v569
          %v572 = vunpack.c.h.b16 %v569
          %v573 = vpack.c.b16 %v571, %v571
          %v574 = vpack.c.b16 %v572, %v572
          %577 = vst [vmem:[#allocation2] sm:$0xf] %v573
          %578 = vst [vmem:[#allocation2 + $0x4] sm:$0xf] %v574
          %vm579 = vcmask 7168
          %580 = vst.msk [vmem:[#allocation4] sm:$0xff] %vm579, -1e+30
          %581 = vst.msk [vmem:[#allocation4 + $0x8] sm:$0xff] %vm579, -1e+30
          %582 = vst.msk [vmem:[#allocation4 + $0x10] sm:$0xff] %vm579, -1e+30
          %583 = vst.msk [vmem:[#allocation4 + $0x18] sm:$0xff] %vm579, -1e+30
          %584 = vst.msk [vmem:[#allocation4 + $0x20] sm:$0xff] %vm579, -1e+30
          %585 = vst.msk [vmem:[#allocation4 + $0x28] sm:$0xff] %vm579, -1e+30
          %586 = vst.msk [vmem:[#allocation4 + $0x30] sm:$0xff] %vm579, -1e+30
          %587 = vst.msk [vmem:[#allocation4 + $0x38] sm:$0xff] %vm579, -1e+30
          %588 = vst.msk [vmem:[#allocation5] sm:$0xff] %vm579, 0.0
          %589 = vst.msk [vmem:[#allocation5 + $0x8] sm:$0xff] %vm579, 0.0
          %590 = vst.msk [vmem:[#allocation5 + $0x10] sm:$0xff] %vm579, 0.0
          %591 = vst.msk [vmem:[#allocation5 + $0x18] sm:$0xff] %vm579, 0.0
          %592 = vst.msk [vmem:[#allocation5 + $0x20] sm:$0xff] %vm579, 0.0
          %593 = vst.msk [vmem:[#allocation5 + $0x28] sm:$0xff] %vm579, 0.0
          %594 = vst.msk [vmem:[#allocation5 + $0x30] sm:$0xff] %vm579, 0.0
          %595 = vst.msk [vmem:[#allocation5 + $0x38] sm:$0xff] %vm579, 0.0
          %596 = vst [vmem:[#allocation6] sm:$0xff] 0.0
          %597 = vst [vmem:[#allocation6 + $0x8] sm:$0xff] 0.0
        $region76: #{tpu_custom_call.1} parent=51 // pred_fallthru
          _
        %s598 = smul.u32 %s36, 16
        %p599 = scmp.eq.s32.totalorder %s35, 0
        // Predicated region
        $region77: #{tpu_custom_call.1} parent=51 // pred_check
          %p600 = pneg %p599
        $region78: #{tpu_custom_call.1} parent=51 // pred_check_branch
          %602 = sbr.rel (%p600) target = $region80
        $region79: #{tpu_custom_call.1} parent=51 // pred_region
          %v603 = vld [vmem:[%s392] sm:$0xff]
          %v604 = vld [vmem:[%s392 + $0x8] sm:$0xff]
          %v605 = vpack.c.bf16 %v604, %v603
          %v606 = vld [vmem:[#allocation13] sm:$0xff]
          %v607 = vld [vmem:[#allocation13 + $0x8] sm:$0xff]
          %v608 = vld [vmem:[#allocation13 + $0x10] sm:$0xff]
          %v609 = vld [vmem:[#allocation13 + $0x18] sm:$0xff]
          %v610 = vld [vmem:[#allocation13 + $0x20] sm:$0xff]
          %v611 = vld [vmem:[#allocation13 + $0x28] sm:$0xff]
          %v612 = vld [vmem:[#allocation13 + $0x30] sm:$0xff]
          %v613 = vld [vmem:[#allocation13 + $0x38] sm:$0xff]
          %v614 = vld [vmem:[#allocation13 + $0x40] sm:$0xff]
          %v615 = vld [vmem:[#allocation13 + $0x48] sm:$0xff]
          %v616 = vld [vmem:[#allocation13 + $0x50] sm:$0xff]
          %v617 = vld [vmem:[#allocation13 + $0x58] sm:$0xff]
          %v618 = vld [vmem:[#allocation13 + $0x60] sm:$0xff]
          %v619 = vld [vmem:[#allocation13 + $0x68] sm:$0xff]
          %v620 = vld [vmem:[#allocation13 + $0x70] sm:$0xff]
          %v621 = vld [vmem:[#allocation13 + $0x78] sm:$0xff]
          %v622 = vld [vmem:[%s5] sm:$0x3]
          %v624 = vlaneseq
          %v625 = vshrl.u32 %v624, 7
          %v626 = vsub.s32 0, %v625
          %v627 = vrot.slane %v622, %v626
          %v628 = vlaneseq
          %v629 = vshrl.u32 %v628, 7
          %v630 = vsub.s32 1, %v629
          %v631 = vrot.slane %v622, %v630
          %v650 = vunpack.c.l.b16 %v606
          %v651 = vunpack.c.h.b16 %v606
          %v652 = vunpack.c.l.b16 %v607
          %v653 = vunpack.c.h.b16 %v607
          %v654 = vunpack.c.l.b16 %v608
          %v655 = vunpack.c.h.b16 %v608
          %v656 = vunpack.c.l.b16 %v609
          %v657 = vunpack.c.h.b16 %v609
          %v658 = vunpack.c.l.b16 %v610
          %v659 = vunpack.c.h.b16 %v610
          %v660 = vunpack.c.l.b16 %v611
          %v661 = vunpack.c.h.b16 %v611
          %v662 = vunpack.c.l.b16 %v612
          %v663 = vunpack.c.h.b16 %v612
          %v664 = vunpack.c.l.b16 %v613
          %v665 = vunpack.c.h.b16 %v613
          %v666 = vunpack.c.l.b16 %v614
          %v667 = vunpack.c.h.b16 %v614
          %v668 = vunpack.c.l.b16 %v615
          %v669 = vunpack.c.h.b16 %v615
          %v670 = vunpack.c.l.b16 %v616
          %v671 = vunpack.c.h.b16 %v616
          %v672 = vunpack.c.l.b16 %v617
          %v673 = vunpack.c.h.b16 %v617
          %v674 = vunpack.c.l.b16 %v618
          %v675 = vunpack.c.h.b16 %v618
          %v676 = vunpack.c.l.b16 %v619
          %v677 = vunpack.c.h.b16 %v619
          %v678 = vunpack.c.l.b16 %v620
          %v679 = vunpack.c.h.b16 %v620
          %v680 = vunpack.c.l.b16 %v621
          %v681 = vunpack.c.h.b16 %v621
          %v682 = vpack.c.b16 %v652, %v650
          %v683 = vpack.c.b16 %v653, %v651
          %v684 = vpack.c.b16 %v656, %v654
          %v685 = vpack.c.b16 %v657, %v655
          %v686 = vpack.c.b16 %v660, %v658
          %v687 = vpack.c.b16 %v661, %v659
          %v688 = vpack.c.b16 %v664, %v662
          %v689 = vpack.c.b16 %v665, %v663
          %v690 = vpack.c.b16 %v668, %v666
          %v691 = vpack.c.b16 %v669, %v667
          %v692 = vpack.c.b16 %v672, %v670
          %v693 = vpack.c.b16 %v673, %v671
          %v694 = vpack.c.b16 %v676, %v674
          %v695 = vpack.c.b16 %v677, %v675
          %v696 = vpack.c.b16 %v680, %v678
          %v697 = vpack.c.b16 %v681, %v679
          %714 = vmatprep.subr.bf16.mxu0 %v697
          %715 = vmatpush1.bf16.msra.mxu0 %v696
          %716 = vmatprep.subr.bf16.mxu0 %v695
          %717 = vmatpush1.bf16.msra.mxu0 %v694
          %718 = vmatprep.subr.bf16.mxu0 %v693
          %719 = vmatpush1.bf16.msra.mxu0 %v692
          %720 = vmatprep.subr.bf16.mxu0 %v691
          %721 = vmatpush1.bf16.msra.mxu0 %v690
          %722 = vmatprep.subr.bf16.mxu0 %v689
          %723 = vmatpush1.bf16.msra.mxu0 %v688
          %724 = vmatprep.subr.bf16.mxu0 %v687
          %725 = vmatpush1.bf16.msra.mxu0 %v686
          %726 = vmatprep.subr.bf16.mxu0 %v685
          %727 = vmatpush1.bf16.msra.mxu0 %v684
          %728 = vmatprep.subr.bf16.mxu0 %v683
          %729 = vmatpush1.bf16.msra.mxu0 %v682
          %730 = vmatprep.subr.bf16.mxu0 0
          %731 = vmatpush2.bf16.msra.mxu0 0
          %732 = vmatprep.subr.bf16.mxu0 0
          %733 = vmatpush2.bf16.msra.mxu0 0
          %734 = vmatprep.subr.bf16.mxu0 0
          %735 = vmatpush2.bf16.msra.mxu0 0
          %736 = vmatprep.subr.bf16.mxu0 0
          %737 = vmatpush2.bf16.msra.mxu0 0
          %738 = vmatprep.subr.bf16.mxu0 0
          %739 = vmatpush2.bf16.msra.mxu0 0
          %740 = vmatprep.subr.bf16.mxu0 0
          %741 = vmatpush2.bf16.msra.mxu0 0
          %742 = vmatprep.subr.bf16.mxu0 0
          %743 = vmatpush2.bf16.msra.mxu0 0
          %744 = vmatprep.subr.bf16.mxu0 0
          %745 = vmatpush2.bf16.msra.mxu0 0
          %746 = vmatprep.mubr.bf16.mxu0 0
          %747 = vmatmul.mubr.bf16.gmra.mxu0 %v605
          %v748 = vpop.f32.mrf.mxu0
          %v749 = vadd.f32 %v627, %v748
          %v750 = vpop.f32.mrf.mxu0
          %v751 = vadd.f32 %v631, %v750
          %v752 = vpop.f32.mrf.mxu0
          %v753 = vadd.f32 %v627, %v752
          %v754 = vpop.f32.mrf.mxu0
          %v755 = vadd.f32 %v631, %v754
          %756 = vdwg.mxu0
          %v757 = vpack.c.bf16 %v753, %v749
          %v758 = vpack.c.bf16 %v755, %v751
          %v761 = vunpack.c.l.b16 %v757
          %v762 = vunpack.c.l.b16 %v758
          %v763 = vunpack.c.h.b16 %v757
          %v764 = vunpack.c.h.b16 %v758
          %v765 = vpack.c.b16 %v762, %v761
          %v766 = vpack.c.b16 %v764, %v763
          %s769 = sshra.s32 %s598, 3
          %s770 = sand.u32 %s598, 7
          %s771 = smul.u32 %s769, 2
          %s772 = smul.addr %s771, 4
          %s773 = scalar_lea.vmem [#allocation3], %s772
          %774 = vst [vmem:[%s773] sm:$0xff] %v765
          %775 = vst [vmem:[%s773 + $0x8] sm:$0xff] %v766
        $region80: #{tpu_custom_call.1} parent=51 // pred_fallthru
          _
        %s776 = sshra.s32 %s598, 3
        %s777 = sand.u32 %s598, 7
        %s778 = smul.u32 %s776, 2
        %s779 = smul.addr %s778, 4
        %s780 = scalar_lea.vmem [#allocation3], %s779
        %v781 = vld [vmem:[%s780] sm:$0xf]
        %v782 = vld [vmem:[%s780 + $0x8] sm:$0xf]
        %v783 = vld [vmem:[%s780 + $0x4] sm:$0xf]
        %v784 = vld [vmem:[%s780 + $0xc] sm:$0xf]
        %v785 = vld [vmem:[#allocation2] sm:$0xf]
        %v786 = vld [vmem:[#allocation2 + $0x4] sm:$0xf]
        %v789 = vunpack.c.l.b16 %v785
        %v790 = vunpack.c.l.b16 %v786
        %v791 = vpack.c.b16 %v790, %v789
        %v794 = vunpack.c.l.b16 %v781
        %v795 = vunpack.c.l.b16 %v782
        %v796 = vpack.c.b16 %v795, %v794
        %vm797 = vcmask 261120
        %v799 = vsel %vm797, %v791, 0
        %v802 = vsel %vm797, %v796, 0
        %804 = vmatprep.subr.bf16.mxu0 0
        %805 = vmatpush1.bf16.xpose.msra.mxu0 0
        %806 = vmatprep.subr.bf16.mxu0 0
        %807 = vmatpush1.bf16.xpose.msra.mxu0 0
        %808 = vmatprep.subr.bf16.mxu0 0
        %809 = vmatpush1.bf16.xpose.msra.mxu0 0
        %810 = vmatprep.subr.bf16.mxu0 0
        %811 = vmatpush1.bf16.xpose.msra.mxu0 0
        %812 = vmatprep.subr.bf16.mxu0 0
        %813 = vmatpush1.bf16.xpose.msra.mxu0 0
        %814 = vmatprep.subr.bf16.mxu0 0
        %815 = vmatpush1.bf16.xpose.msra.mxu0 0
        %816 = vmatprep.subr.bf16.mxu0 0
        %817 = vmatpush1.bf16.xpose.msra.mxu0 0
        %818 = vmatprep.subr.bf16.mxu0 0
        %819 = vmatpush1.bf16.xpose.msra.mxu0 %v802
        %820 = vmatprep.subr.bf16.mxu0 0
        %821 = vmatpush2.bf16.xpose.msra.mxu0 0
        %822 = vmatprep.subr.bf16.mxu0 0
        %823 = vmatpush2.bf16.xpose.msra.mxu0 0
        %824 = vmatprep.subr.bf16.mxu0 0
        %825 = vmatpush2.bf16.xpose.msra.mxu0 0
        %826 = vmatprep.subr.bf16.mxu0 0
        %827 = vmatpush2.bf16.xpose.msra.mxu0 0
        %828 = vmatprep.subr.bf16.mxu0 0
        %829 = vmatpush2.bf16.xpose.msra.mxu0 0
        %830 = vmatprep.subr.bf16.mxu0 0
        %831 = vmatpush2.bf16.xpose.msra.mxu0 0
        %832 = vmatprep.subr.bf16.mxu0 0
        %833 = vmatpush2.bf16.xpose.msra.mxu0 0
        %834 = vmatprep.subr.bf16.mxu0 0
        %835 = vmatpush2.bf16.xpose.msra.mxu0 0
        %836 = vmatprep.mubr.bf16.mxu0 0
        %837 = vmatmul.mubr.bf16.gmra.mxu0 %v799
        %v838 = vpop.f32.mrf.mxu0
        %v839 = vadd.f32 0.0, %v838
        %v840 = vpop.f32.mrf.mxu0
        %v841 = vpop.f32.mrf.mxu0
        %v842 = vadd.f32 0.0, %v841
        %v843 = vpop.f32.mrf.mxu0
        %844 = vdwg.mxu0
        %v845 = vld [vmem:[#allocation4] sm:$0xff]
        %v846 = vld [vmem:[#allocation4 + $0x8] sm:$0xff]
        %v847 = vld [vmem:[#allocation5] sm:$0xff]
        %v848 = vld [vmem:[#allocation5 + $0x8] sm:$0xff]
        %vm849 = vcmask 130048
        %v850 = vsel %vm849, %v839, -inf
        %851 = vmax.xlane.f32.xlu0 %v850
        %v852 = vpop.xlane.xlu0 %851
        %v853 = vsel %vm849, %v842, -inf
        %854 = vmax.xlane.f32.xlu0 %v853
        %v855 = vpop.xlane.xlu0 %854
        %v856 = vmax.f32 %v845, %v852
        %v857 = vmax.f32 %v846, %v855
        %v858 = vsub.f32 %v845, %v856
        %v859 = vsub.f32 %v846, %v857
        %v860 = vmul.f32 %v858, 1.442695
        %v861 = vpow.pop %v860
        %v862 = vmul.f32 %v859, 1.442695
        %v863 = vpow.pop %v862
        %865 = vset.pattern.permute.xlu0 0
        %866 = vperm.xlu0 %865, %v856
        %v867 = vpop.permute.xlu0 %866
        %870 = vset.pattern.permute.xlu0 0
        %871 = vperm.xlu0 %870, %v857
        %v872 = vpop.permute.xlu0 %871
        %v874 = vsub.f32 %v839, %v867
        %v875 = vsub.f32 %v842, %v872
        %v876 = vmul.f32 %v874, 1.442695
        %v877 = vpow.pop %v876
        %v878 = vmul.f32 %v875, 1.442695
        %v879 = vpow.pop %v878
        %v880 = vmul.f32 %v861, %v847
        %v881 = vmul.f32 %v863, %v848
        %v882 = vsel %vm849, %v877, 0.0
        %883 = vadd.xlane.f32.xlu0 %v882
        %v884 = vpop.xlane.xlu0 %883
        %v885 = vsel %vm849, %v879, 0.0
        %886 = vadd.xlane.f32.xlu0 %v885
        %v887 = vpop.xlane.xlu0 %886
        %v888 = vadd.f32 %v880, %v884
        %v889 = vadd.f32 %v881, %v887
        %vm890 = vcmask 7168
        %891 = vst.msk [vmem:[#allocation5] sm:$0xff] %vm890, %v888
        %892 = vst.msk [vmem:[#allocation5 + $0x8] sm:$0xff] %vm890, %v889
        %893 = vst.msk [vmem:[#allocation4] sm:$0xff] %vm890, %v856
        %894 = vst.msk [vmem:[#allocation4 + $0x8] sm:$0xff] %vm890, %v857
        %v895 = vld [vmem:[#allocation6] sm:$0xff]
        %v896 = vld [vmem:[#allocation6 + $0x8] sm:$0xff]
        %898 = vset.pattern.permute.xlu0 0
        %899 = vperm.xlu0 %898, %v861
        %v900 = vpop.permute.xlu0 %899
        %903 = vset.pattern.permute.xlu0 0
        %904 = vperm.xlu0 %903, %v863
        %v905 = vpop.permute.xlu0 %904
        %v907 = vmul.f32 %v900, %v895
        %v908 = vmul.f32 %v905, %v896
        %v909 = vpack.c.bf16 %v879, %v877
        %v912 = vunpack.c.l.b16 %v783
        %v913 = vunpack.c.l.b16 %v784
        %v914 = vpack.c.b16 %v913, %v912
        %v917 = vsel %vm849, %v909, 0
        %919 = vmatprep.subr.bf16.mxu0 0
        %920 = vmatpush1.bf16.msra.mxu0 0
        %921 = vmatprep.subr.bf16.mxu0 0
        %922 = vmatpush1.bf16.msra.mxu0 0
        %923 = vmatprep.subr.bf16.mxu0 0
        %924 = vmatpush1.bf16.msra.mxu0 0
        %925 = vmatprep.subr.bf16.mxu0 0
        %926 = vmatpush1.bf16.msra.mxu0 0
        %927 = vmatprep.subr.bf16.mxu0 0
        %928 = vmatpush1.bf16.msra.mxu0 0
        %929 = vmatprep.subr.bf16.mxu0 0
        %930 = vmatpush1.bf16.msra.mxu0 0
        %931 = vmatprep.subr.bf16.mxu0 0
        %932 = vmatpush1.bf16.msra.mxu0 0
        %933 = vmatprep.subr.bf16.mxu0 0
        %934 = vmatpush1.bf16.msra.mxu0 %v914
        %935 = vmatprep.subr.bf16.mxu0 0
        %936 = vmatpush2.bf16.msra.mxu0 0
        %937 = vmatprep.subr.bf16.mxu0 0
        %938 = vmatpush2.bf16.msra.mxu0 0
        %939 = vmatprep.subr.bf16.mxu0 0
        %940 = vmatpush2.bf16.msra.mxu0 0
        %941 = vmatprep.subr.bf16.mxu0 0
        %942 = vmatpush2.bf16.msra.mxu0 0
        %943 = vmatprep.subr.bf16.mxu0 0
        %944 = vmatpush2.bf16.msra.mxu0 0
        %945 = vmatprep.subr.bf16.mxu0 0
        %946 = vmatpush2.bf16.msra.mxu0 0
        %947 = vmatprep.subr.bf16.mxu0 0
        %948 = vmatpush2.bf16.msra.mxu0 0
        %949 = vmatprep.subr.bf16.mxu0 0
        %950 = vmatpush2.bf16.msra.mxu0 0
        %951 = vmatprep.mubr.bf16.mxu0 0
        %952 = vmatmul.mubr.bf16.gmra.mxu0 %v917
        %v953 = vpop.f32.mrf.mxu0
        %v954 = vadd.f32 0.0, %v953
        %v955 = vpop.f32.mrf.mxu0
        %v956 = vpop.f32.mrf.mxu0
        %v957 = vadd.f32 0.0, %v956
        %v958 = vpop.f32.mrf.mxu0
        %959 = vdwg.mxu0
        %v960 = vadd.f32 %v907, %v954
        %v961 = vadd.f32 %v908, %v957
        %962 = vst.msk [vmem:[#allocation6] sm:$0xff] %vm797, %v960
        %963 = vst.msk [vmem:[#allocation6 + $0x8] sm:$0xff] %vm797, %v961
        %v964 = vld [vmem:[#allocation2] sm:$0xf]
        %v965 = vld [vmem:[#allocation2 + $0x4] sm:$0xf]
        %v968 = vunpack.c.l.b16 %v964
        %v969 = vunpack.c.l.b16 %v965
        %v970 = vpack.c.b16 %v969, %v968
        %971 = vrot.lane.b32.xlu0 %v970, 96
        %v972 = vpop.permute.xlu0 %971
        %973 = vrot.lane.b32.xlu0 %v796, 96
        %v974 = vpop.permute.xlu0 %973
        %v976 = vsel %vm797, %v972, 0
        %v979 = vsel %vm797, %v974, 0
        %981 = vmatprep.subr.bf16.mxu0 0
        %982 = vmatpush1.bf16.xpose.msra.mxu0 0
        %983 = vmatprep.subr.bf16.mxu0 0
        %984 = vmatpush1.bf16.xpose.msra.mxu0 0
        %985 = vmatprep.subr.bf16.mxu0 0
        %986 = vmatpush1.bf16.xpose.msra.mxu0 0
        %987 = vmatprep.subr.bf16.mxu0 0
        %988 = vmatpush1.bf16.xpose.msra.mxu0 0
        %989 = vmatprep.subr.bf16.mxu0 0
        %990 = vmatpush1.bf16.xpose.msra.mxu0 0
        %991 = vmatprep.subr.bf16.mxu0 0
        %992 = vmatpush1.bf16.xpose.msra.mxu0 0
        %993 = vmatprep.subr.bf16.mxu0 0
        %994 = vmatpush1.bf16.xpose.msra.mxu0 0
        %995 = vmatprep.subr.bf16.mxu0 0
        %996 = vmatpush1.bf16.xpose.msra.mxu0 %v979
        %997 = vmatprep.subr.bf16.mxu0 0
        %998 = vmatpush2.bf16.xpose.msra.mxu0 0
        %999 = vmatprep.subr.bf16.mxu0 0
        %1000 = vmatpush2.bf16.xpose.msra.mxu0 0
        %1001 = vmatprep.subr.bf16.mxu0 0
        %1002 = vmatpush2.bf16.xpose.msra.mxu0 0
        %1003 = vmatprep.subr.bf16.mxu0 0
        %1004 = vmatpush2.bf16.xpose.msra.mxu0 0
        %1005 = vmatprep.subr.bf16.mxu0 0
        %1006 = vmatpush2.bf16.xpose.msra.mxu0 0
        %1007 = vmatprep.subr.bf16.mxu0 0
        %1008 = vmatpush2.bf16.xpose.msra.mxu0 0
        %1009 = vmatprep.subr.bf16.mxu0 0
        %1010 = vmatpush2.bf16.xpose.msra.mxu0 0
        %1011 = vmatprep.subr.bf16.mxu0 0
        %1012 = vmatpush2.bf16.xpose.msra.mxu0 0
        %1013 = vmatprep.mubr.bf16.mxu0 0
        %1014 = vmatmul.mubr.bf16.gmra.mxu0 %v976
        %v1015 = vpop.f32.mrf.mxu0
        %v1016 = vadd.f32 0.0, %v1015
        %v1017 = vpop.f32.mrf.mxu0
        %v1018 = vpop.f32.mrf.mxu0
        %v1019 = vadd.f32 0.0, %v1018
        %v1020 = vpop.f32.mrf.mxu0
        %1021 = vdwg.mxu0
        %s1022 = scalar_lea.vmem [#allocation4], 16
        %v1023 = vld [vmem:[%s1022] sm:$0xff]
        %v1024 = vld [vmem:[%s1022 + $0x8] sm:$0xff]
        %s1025 = scalar_lea.vmem [#allocation5], 16
        %v1026 = vld [vmem:[%s1025] sm:$0xff]
        %v1027 = vld [vmem:[%s1025 + $0x8] sm:$0xff]
        %v1028 = vsel %vm849, %v1016, -inf
        %1029 = vmax.xlane.f32.xlu0 %v1028
        %v1030 = vpop.xlane.xlu0 %1029
        %v1031 = vsel %vm849, %v1019, -inf
        %1032 = vmax.xlane.f32.xlu0 %v1031
        %v1033 = vpop.xlane.xlu0 %1032
        %v1034 = vmax.f32 %v1023, %v1030
        %v1035 = vmax.f32 %v1024, %v1033
        %v1036 = vsub.f32 %v1023, %v1034
        %v1037 = vsub.f32 %v1024, %v1035
        %v1038 = vmul.f32 %v1036, 1.442695
        %v1039 = vpow.pop %v1038
        %v1040 = vmul.f32 %v1037, 1.442695
        %v1041 = vpow.pop %v1040
        %1043 = vset.pattern.permute.xlu0 0
        %1044 = vperm.xlu0 %1043, %v1034
        %v1045 = vpop.permute.xlu0 %1044
        %1048 = vset.pattern.permute.xlu0 0
        %1049 = vperm.xlu0 %1048, %v1035
        %v1050 = vpop.permute.xlu0 %1049
        %v1052 = vsub.f32 %v1016, %v1045
        %v1053 = vsub.f32 %v1019, %v1050
        %v1054 = vmul.f32 %v1052, 1.442695
        %v1055 = vpow.pop %v1054
        %v1056 = vmul.f32 %v1053, 1.442695
        %v1057 = vpow.pop %v1056
        %v1058 = vmul.f32 %v1039, %v1026
        %v1059 = vmul.f32 %v1041, %v1027
        %v1060 = vsel %vm849, %v1055, 0.0
        %1061 = vadd.xlane.f32.xlu0 %v1060
        %v1062 = vpop.xlane.xlu0 %1061
        %v1063 = vsel %vm849, %v1057, 0.0
        %1064 = vadd.xlane.f32.xlu0 %v1063
        %v1065 = vpop.xlane.xlu0 %1064
        %v1066 = vadd.f32 %v1058, %v1062
        %v1067 = vadd.f32 %v1059, %v1065
        %1068 = vst.msk [vmem:[%s1025] sm:$0xff] %vm890, %v1066
        %1069 = vst.msk [vmem:[%s1025 + $0x8] sm:$0xff] %vm890, %v1067
        %1070 = vst.msk [vmem:[%s1022] sm:$0xff] %vm890, %v1034
        %1071 = vst.msk [vmem:[%s1022 + $0x8] sm:$0xff] %vm890, %v1035
        %v1072 = vld [vmem:[#allocation6] sm:$0xff]
        %v1073 = vld [vmem:[#allocation6 + $0x8] sm:$0xff]
        %1075 = vset.pattern.permute.xlu0 0
        %1076 = vperm.xlu0 %1075, %v1039
        %v1077 = vpop.permute.xlu0 %1076
        %1080 = vset.pattern.permute.xlu0 0
        %1081 = vperm.xlu0 %1080, %v1041
        %v1082 = vpop.permute.xlu0 %1081
        %v1084 = vmul.f32 %v1077, %v1072
        %v1085 = vmul.f32 %v1082, %v1073
        %v1086 = vpack.c.bf16 %v1057, %v1055
        %1087 = vrot.lane.b32.xlu0 %v914, 96
        %v1088 = vpop.permute.xlu0 %1087
        %v1091 = vsel %vm849, %v1086, 0
        %1093 = vmatprep.subr.bf16.mxu0 0
        %1094 = vmatpush1.bf16.msra.mxu0 0
        %1095 = vmatprep.subr.bf16.mxu0 0
        %1096 = vmatpush1.bf16.msra.mxu0 0
        %1097 = vmatprep.subr.bf16.mxu0 0
        %1098 = vmatpush1.bf16.msra.mxu0 0
        %1099 = vmatprep.subr.bf16.mxu0 0
        %1100 = vmatpush1.bf16.msra.mxu0 0
        %1101 = vmatprep.subr.bf16.mxu0 0
        %1102 = vmatpush1.bf16.msra.mxu0 0
        %1103 = vmatprep.subr.bf16.mxu0 0
        %1104 = vmatpush1.bf16.msra.mxu0 0
        %1105 = vmatprep.subr.bf16.mxu0 0
        %1106 = vmatpush1.bf16.msra.mxu0 0
        %1107 = vmatprep.subr.bf16.mxu0 0
        %1108 = vmatpush1.bf16.msra.mxu0 %v1088
        %1109 = vmatprep.subr.bf16.mxu0 0
        %1110 = vmatpush2.bf16.msra.mxu0 0
        %1111 = vmatprep.subr.bf16.mxu0 0
        %1112 = vmatpush2.bf16.msra.mxu0 0
        %1113 = vmatprep.subr.bf16.mxu0 0
        %1114 = vmatpush2.bf16.msra.mxu0 0
        %1115 = vmatprep.subr.bf16.mxu0 0
        %1116 = vmatpush2.bf16.msra.mxu0 0
        %1117 = vmatprep.subr.bf16.mxu0 0
        %1118 = vmatpush2.bf16.msra.mxu0 0
        %1119 = vmatprep.subr.bf16.mxu0 0
        %1120 = vmatpush2.bf16.msra.mxu0 0
        %1121 = vmatprep.subr.bf16.mxu0 0
        %1122 = vmatpush2.bf16.msra.mxu0 0
        %1123 = vmatprep.subr.bf16.mxu0 0
        %1124 = vmatpush2.bf16.msra.mxu0 0
        %1125 = vmatprep.mubr.bf16.mxu0 0
        %1126 = vmatmul.mubr.bf16.gmra.mxu0 %v1091
        %v1127 = vpop.f32.mrf.mxu0
        %v1128 = vadd.f32 0.0, %v1127
        %v1129 = vpop.f32.mrf.mxu0
        %v1130 = vpop.f32.mrf.mxu0
        %v1131 = vadd.f32 0.0, %v1130
        %v1132 = vpop.f32.mrf.mxu0
        %1133 = vdwg.mxu0
        %1136 = vrot.lane.b32.xlu0 %v1128, 32
        %v1137 = vpop.permute.xlu0 %1136
        %1138 = vrot.lane.b32.xlu0 %v1131, 32
        %v1139 = vpop.permute.xlu0 %1138
        %v1142 = vadd.f32 %v1084, %v1137
        %v1143 = vadd.f32 %v1085, %v1139
        %vm1144 = vcmask 523520
        %1145 = vst.msk [vmem:[#allocation6] sm:$0xff] %vm1144, %v1142
        %1146 = vst.msk [vmem:[#allocation6 + $0x8] sm:$0xff] %vm1144, %v1143
        %v1147 = vld [vmem:[#allocation2] sm:$0xf]
        %v1148 = vld [vmem:[#allocation2 + $0x4] sm:$0xf]
        %v1151 = vunpack.c.l.b16 %v1147
        %v1152 = vunpack.c.l.b16 %v1148
        %v1153 = vpack.c.b16 %v1152, %v1151
        %1154 = vrot.lane.b32.xlu0 %v1153, 64
        %v1155 = vpop.permute.xlu0 %1154
        %1156 = vrot.lane.b32.xlu0 %v796, 64
        %v1157 = vpop.permute.xlu0 %1156
        %v1159 = vsel %vm797, %v1155, 0
        %v1162 = vsel %vm797, %v1157, 0
        %1164 = vmatprep.subr.bf16.mxu0 0
        %1165 = vmatpush1.bf16.xpose.msra.mxu0 0
        %1166 = vmatprep.subr.bf16.mxu0 0
        %1167 = vmatpush1.bf16.xpose.msra.mxu0 0
        %1168 = vmatprep.subr.bf16.mxu0 0
        %1169 = vmatpush1.bf16.xpose.msra.mxu0 0
        %1170 = vmatprep.subr.bf16.mxu0 0
        %1171 = vmatpush1.bf16.xpose.msra.mxu0 0
        %1172 = vmatprep.subr.bf16.mxu0 0
        %1173 = vmatpush1.bf16.xpose.msra.mxu0 0
        %1174 = vmatprep.subr.bf16.mxu0 0
        %1175 = vmatpush1.bf16.xpose.msra.mxu0 0
        %1176 = vmatprep.subr.bf16.mxu0 0
        %1177 = vmatpush1.bf16.xpose.msra.mxu0 0
        %1178 = vmatprep.subr.bf16.mxu0 0
        %1179 = vmatpush1.bf16.xpose.msra.mxu0 %v1162
        %1180 = vmatprep.subr.bf16.mxu0 0
        %1181 = vmatpush2.bf16.xpose.msra.mxu0 0
        %1182 = vmatprep.subr.bf16.mxu0 0
        %1183 = vmatpush2.bf16.xpose.msra.mxu0 0
        %1184 = vmatprep.subr.bf16.mxu0 0
        %1185 = vmatpush2.bf16.xpose.msra.mxu0 0
        %1186 = vmatprep.subr.bf16.mxu0 0
        %1187 = vmatpush2.bf16.xpose.msra.mxu0 0
        %1188 = vmatprep.subr.bf16.mxu0 0
        %1189 = vmatpush2.bf16.xpose.msra.mxu0 0
        %1190 = vmatprep.subr.bf16.mxu0 0
        %1191 = vmatpush2.bf16.xpose.msra.mxu0 0
        %1192 = vmatprep.subr.bf16.mxu0 0
        %1193 = vmatpush2.bf16.xpose.msra.mxu0 0
        %1194 = vmatprep.subr.bf16.mxu0 0
        %1195 = vmatpush2.bf16.xpose.msra.mxu0 0
        %1196 = vmatprep.mubr.bf16.mxu0 0
        %1197 = vmatmul.mubr.bf16.gmra.mxu0 %v1159
        %v1198 = vpop.f32.mrf.mxu0
        %v1199 = vadd.f32 0.0, %v1198
        %v1200 = vpop.f32.mrf.mxu0
        %v1201 = vpop.f32.mrf.mxu0
        %v1202 = vadd.f32 0.0, %v1201
        %v1203 = vpop.f32.mrf.mxu0
        %1204 = vdwg.mxu0
        %s1205 = scalar_lea.vmem [#allocation4], 32
        %v1206 = vld [vmem:[%s1205] sm:$0xff]
        %v1207 = vld [vmem:[%s1205 + $0x8] sm:$0xff]
        %s1208 = scalar_lea.vmem [#allocation5], 32
        %v1209 = vld [vmem:[%s1208] sm:$0xff]
        %v1210 = vld [vmem:[%s1208 + $0x8] sm:$0xff]
        %v1211 = vsel %vm849, %v1199, -inf
        %1212 = vmax.xlane.f32.xlu0 %v1211
        %v1213 = vpop.xlane.xlu0 %1212
        %v1214 = vsel %vm849, %v1202, -inf
        %1215 = vmax.xlane.f32.xlu0 %v1214
        %v1216 = vpop.xlane.xlu0 %1215
        %v1217 = vmax.f32 %v1206, %v1213
        %v1218 = vmax.f32 %v1207, %v1216
        %v1219 = vsub.f32 %v1206, %v1217
        %v1220 = vsub.f32 %v1207, %v1218
        %v1221 = vmul.f32 %v1219, 1.442695
        %v1222 = vpow.pop %v1221
        %v1223 = vmul.f32 %v1220, 1.442695
        %v1224 = vpow.pop %v1223
        %1226 = vset.pattern.permute.xlu0 0
        %1227 = vperm.xlu0 %1226, %v1217
        %v1228 = vpop.permute.xlu0 %1227
        %1231 = vset.pattern.permute.xlu0 0
        %1232 = vperm.xlu0 %1231, %v1218
        %v1233 = vpop.permute.xlu0 %1232
        %v1235 = vsub.f32 %v1199, %v1228
        %v1236 = vsub.f32 %v1202, %v1233
        %v1237 = vmul.f32 %v1235, 1.442695
        %v1238 = vpow.pop %v1237
        %v1239 = vmul.f32 %v1236, 1.442695
        %v1240 = vpow.pop %v1239
        %v1241 = vmul.f32 %v1222, %v1209
        %v1242 = vmul.f32 %v1224, %v1210
        %v1243 = vsel %vm849, %v1238, 0.0
        %1244 = vadd.xlane.f32.xlu0 %v1243
        %v1245 = vpop.xlane.xlu0 %1244
        %v1246 = vsel %vm849, %v1240, 0.0
        %1247 = vadd.xlane.f32.xlu0 %v1246
        %v1248 = vpop.xlane.xlu0 %1247
        %v1249 = vadd.f32 %v1241, %v1245
        %v1250 = vadd.f32 %v1242, %v1248
        %1251 = vst.msk [vmem:[%s1208] sm:$0xff] %vm890, %v1249
        %1252 = vst.msk [vmem:[%s1208 + $0x8] sm:$0xff] %vm890, %v1250
        %1253 = vst.msk [vmem:[%s1205] sm:$0xff] %vm890, %v1217
        %1254 = vst.msk [vmem:[%s1205 + $0x8] sm:$0xff] %vm890, %v1218
        %v1255 = vld [vmem:[#allocation6] sm:$0xff]
        %v1256 = vld [vmem:[#allocation6 + $0x8] sm:$0xff]
        %1258 = vset.pattern.permute.xlu0 0
        %1259 = vperm.xlu0 %1258, %v1222
        %v1260 = vpop.permute.xlu0 %1259
        %1263 = vset.pattern.permute.xlu0 0
        %1264 = vperm.xlu0 %1263, %v1224
        %v1265 = vpop.permute.xlu0 %1264
        %v1267 = vmul.f32 %v1260, %v1255
        %v1268 = vmul.f32 %v1265, %v1256
        %v1269 = vpack.c.bf16 %v1240, %v1238
        %1270 = vrot.lane.b32.xlu0 %v914, 64
        %v1271 = vpop.permute.xlu0 %1270
        %v1274 = vsel %vm849, %v1269, 0
        %1276 = vmatprep.subr.bf16.mxu0 0
        %1277 = vmatpush1.bf16.msra.mxu0 0
        %1278 = vmatprep.subr.bf16.mxu0 0
        %1279 = vmatpush1.bf16.msra.mxu0 0
        %1280 = vmatprep.subr.bf16.mxu0 0
        %1281 = vmatpush1.bf16.msra.mxu0 0
        %1282 = vmatprep.subr.bf16.mxu0 0
        %1283 = vmatpush1.bf16.msra.mxu0 0
        %1284 = vmatprep.subr.bf16.mxu0 0
        %1285 = vmatpush1.bf16.msra.mxu0 0
        %1286 = vmatprep.subr.bf16.mxu0 0
        %1287 = vmatpush1.bf16.msra.mxu0 0
        %1288 = vmatprep.subr.bf16.mxu0 0
        %1289 = vmatpush1.bf16.msra.mxu0 0
        %1290 = vmatprep.subr.bf16.mxu0 0
        %1291 = vmatpush1.bf16.msra.mxu0 %v1271
        %1292 = vmatprep.subr.bf16.mxu0 0
        %1293 = vmatpush2.bf16.msra.mxu0 0
        %1294 = vmatprep.subr.bf16.mxu0 0
        %1295 = vmatpush2.bf16.msra.mxu0 0
        %1296 = vmatprep.subr.bf16.mxu0 0
        %1297 = vmatpush2.bf16.msra.mxu0 0
        %1298 = vmatprep.subr.bf16.mxu0 0
        %1299 = vmatpush2.bf16.msra.mxu0 0
        %1300 = vmatprep.subr.bf16.mxu0 0
        %1301 = vmatpush2.bf16.msra.mxu0 0
        %1302 = vmatprep.subr.bf16.mxu0 0
        %1303 = vmatpush2.bf16.msra.mxu0 0
        %1304 = vmatprep.subr.bf16.mxu0 0
        %1305 = vmatpush2.bf16.msra.mxu0 0
        %1306 = vmatprep.subr.bf16.mxu0 0
        %1307 = vmatpush2.bf16.msra.mxu0 0
        %1308 = vmatprep.mubr.bf16.mxu0 0
        %1309 = vmatmul.mubr.bf16.gmra.mxu0 %v1274
        %v1310 = vpop.f32.mrf.mxu0
        %v1311 = vadd.f32 0.0, %v1310
        %v1312 = vpop.f32.mrf.mxu0
        %v1313 = vpop.f32.mrf.mxu0
        %v1314 = vadd.f32 0.0, %v1313
        %v1315 = vpop.f32.mrf.mxu0
        %1316 = vdwg.mxu0
        %1319 = vrot.lane.b32.xlu0 %v1311, 64
        %v1320 = vpop.permute.xlu0 %1319
        %1321 = vrot.lane.b32.xlu0 %v1314, 64
        %v1322 = vpop.permute.xlu0 %1321
        %v1325 = vadd.f32 %v1267, %v1320
        %v1326 = vadd.f32 %v1268, %v1322
        %vm1327 = vcmask 785920
        %1328 = vst.msk [vmem:[#allocation6] sm:$0xff] %vm1327, %v1325
        %1329 = vst.msk [vmem:[#allocation6 + $0x8] sm:$0xff] %vm1327, %v1326
        %v1330 = vld [vmem:[#allocation2] sm:$0xf]
        %v1331 = vld [vmem:[#allocation2 + $0x4] sm:$0xf]
        %v1334 = vunpack.c.l.b16 %v1330
        %v1335 = vunpack.c.l.b16 %v1331
        %v1336 = vpack.c.b16 %v1335, %v1334
        %1337 = vrot.lane.b32.xlu0 %v1336, 32
        %v1338 = vpop.permute.xlu0 %1337
        %1339 = vrot.lane.b32.xlu0 %v796, 32
        %v1340 = vpop.permute.xlu0 %1339
        %v1342 = vsel %vm797, %v1338, 0
        %v1345 = vsel %vm797, %v1340, 0
        %1347 = vmatprep.subr.bf16.mxu0 0
        %1348 = vmatpush1.bf16.xpose.msra.mxu0 0
        %1349 = vmatprep.subr.bf16.mxu0 0
        %1350 = vmatpush1.bf16.xpose.msra.mxu0 0
        %1351 = vmatprep.subr.bf16.mxu0 0
        %1352 = vmatpush1.bf16.xpose.msra.mxu0 0
        %1353 = vmatprep.subr.bf16.mxu0 0
        %1354 = vmatpush1.bf16.xpose.msra.mxu0 0
        %1355 = vmatprep.subr.bf16.mxu0 0
        %1356 = vmatpush1.bf16.xpose.msra.mxu0 0
        %1357 = vmatprep.subr.bf16.mxu0 0
        %1358 = vmatpush1.bf16.xpose.msra.mxu0 0
        %1359 = vmatprep.subr.bf16.mxu0 0
        %1360 = vmatpush1.bf16.xpose.msra.mxu0 0
        %1361 = vmatprep.subr.bf16.mxu0 0
        %1362 = vmatpush1.bf16.xpose.msra.mxu0 %v1345
        %1363 = vmatprep.subr.bf16.mxu0 0
        %1364 = vmatpush2.bf16.xpose.msra.mxu0 0
        %1365 = vmatprep.subr.bf16.mxu0 0
        %1366 = vmatpush2.bf16.xpose.msra.mxu0 0
        %1367 = vmatprep.subr.bf16.mxu0 0
        %1368 = vmatpush2.bf16.xpose.msra.mxu0 0
        %1369 = vmatprep.subr.bf16.mxu0 0
        %1370 = vmatpush2.bf16.xpose.msra.mxu0 0
        %1371 = vmatprep.subr.bf16.mxu0 0
        %1372 = vmatpush2.bf16.xpose.msra.mxu0 0
        %1373 = vmatprep.subr.bf16.mxu0 0
        %1374 = vmatpush2.bf16.xpose.msra.mxu0 0
        %1375 = vmatprep.subr.bf16.mxu0 0
        %1376 = vmatpush2.bf16.xpose.msra.mxu0 0
        %1377 = vmatprep.subr.bf16.mxu0 0
        %1378 = vmatpush2.bf16.xpose.msra.mxu0 0
        %1379 = vmatprep.mubr.bf16.mxu0 0
        %1380 = vmatmul.mubr.bf16.gmra.mxu0 %v1342
        %v1381 = vpop.f32.mrf.mxu0
        %v1382 = vadd.f32 0.0, %v1381
        %v1383 = vpop.f32.mrf.mxu0
        %v1384 = vpop.f32.mrf.mxu0
        %v1385 = vadd.f32 0.0, %v1384
        %v1386 = vpop.f32.mrf.mxu0
        %1387 = vdwg.mxu0
        %s1388 = scalar_lea.vmem [#allocation4], 48
        %v1389 = vld [vmem:[%s1388] sm:$0xff]
        %v1390 = vld [vmem:[%s1388 + $0x8] sm:$0xff]
        %s1391 = scalar_lea.vmem [#allocation5], 48
        %v1392 = vld [vmem:[%s1391] sm:$0xff]
        %v1393 = vld [vmem:[%s1391 + $0x8] sm:$0xff]
        %v1394 = vsel %vm849, %v1382, -inf
        %1395 = vmax.xlane.f32.xlu0 %v1394
        %v1396 = vpop.xlane.xlu0 %1395
        %v1397 = vsel %vm849, %v1385, -inf
        %1398 = vmax.xlane.f32.xlu0 %v1397
        %v1399 = vpop.xlane.xlu0 %1398
        %v1400 = vmax.f32 %v1389, %v1396
        %v1401 = vmax.f32 %v1390, %v1399
        %v1402 = vsub.f32 %v1389, %v1400
        %v1403 = vsub.f32 %v1390, %v1401
        %v1404 = vmul.f32 %v1402, 1.442695
        %v1405 = vpow.pop %v1404
        %v1406 = vmul.f32 %v1403, 1.442695
        %v1407 = vpow.pop %v1406
        %1409 = vset.pattern.permute.xlu0 0
        %1410 = vperm.xlu0 %1409, %v1400
        %v1411 = vpop.permute.xlu0 %1410
        %1414 = vset.pattern.permute.xlu0 0
        %1415 = vperm.xlu0 %1414, %v1401
        %v1416 = vpop.permute.xlu0 %1415
        %v1418 = vsub.f32 %v1382, %v1411
        %v1419 = vsub.f32 %v1385, %v1416
        %v1420 = vmul.f32 %v1418, 1.442695
        %v1421 = vpow.pop %v1420
        %v1422 = vmul.f32 %v1419, 1.442695
        %v1423 = vpow.pop %v1422
        %v1424 = vmul.f32 %v1405, %v1392
        %v1425 = vmul.f32 %v1407, %v1393
        %v1426 = vsel %vm849, %v1421, 0.0
        %1427 = vadd.xlane.f32.xlu0 %v1426
        %v1428 = vpop.xlane.xlu0 %1427
        %v1429 = vsel %vm849, %v1423, 0.0
        %1430 = vadd.xlane.f32.xlu0 %v1429
        %v1431 = vpop.xlane.xlu0 %1430
        %v1432 = vadd.f32 %v1424, %v1428
        %v1433 = vadd.f32 %v1425, %v1431
        %1434 = vst.msk [vmem:[%s1391] sm:$0xff] %vm890, %v1432
        %1435 = vst.msk [vmem:[%s1391 + $0x8] sm:$0xff] %vm890, %v1433
        %1436 = vst.msk [vmem:[%s1388] sm:$0xff] %vm890, %v1400
        %1437 = vst.msk [vmem:[%s1388 + $0x8] sm:$0xff] %vm890, %v1401
        %v1438 = vld [vmem:[#allocation6] sm:$0xff]
        %v1439 = vld [vmem:[#allocation6 + $0x8] sm:$0xff]
        %1441 = vset.pattern.permute.xlu0 0
        %1442 = vperm.xlu0 %1441, %v1405
        %v1443 = vpop.permute.xlu0 %1442
        %1446 = vset.pattern.permute.xlu0 0
        %1447 = vperm.xlu0 %1446, %v1407
        %v1448 = vpop.permute.xlu0 %1447
        %v1450 = vmul.f32 %v1443, %v1438
        %v1451 = vmul.f32 %v1448, %v1439
        %v1452 = vpack.c.bf16 %v1423, %v1421
        %1453 = vrot.lane.b32.xlu0 %v914, 32
        %v1454 = vpop.permute.xlu0 %1453
        %v1457 = vsel %vm849, %v1452, 0
        %1459 = vmatprep.subr.bf16.mxu0 0
        %1460 = vmatpush1.bf16.msra.mxu0 0
        %1461 = vmatprep.subr.bf16.mxu0 0
        %1462 = vmatpush1.bf16.msra.mxu0 0
        %1463 = vmatprep.subr.bf16.mxu0 0
        %1464 = vmatpush1.bf16.msra.mxu0 0
        %1465 = vmatprep.subr.bf16.mxu0 0
        %1466 = vmatpush1.bf16.msra.mxu0 0
        %1467 = vmatprep.subr.bf16.mxu0 0
        %1468 = vmatpush1.bf16.msra.mxu0 0
        %1469 = vmatprep.subr.bf16.mxu0 0
        %1470 = vmatpush1.bf16.msra.mxu0 0
        %1471 = vmatprep.subr.bf16.mxu0 0
        %1472 = vmatpush1.bf16.msra.mxu0 0
        %1473 = vmatprep.subr.bf16.mxu0 0
        %1474 = vmatpush1.bf16.msra.mxu0 %v1454
        %1475 = vmatprep.subr.bf16.mxu0 0
        %1476 = vmatpush2.bf16.msra.mxu0 0
        %1477 = vmatprep.subr.bf16.mxu0 0
        %1478 = vmatpush2.bf16.msra.mxu0 0
        %1479 = vmatprep.subr.bf16.mxu0 0
        %1480 = vmatpush2.bf16.msra.mxu0 0
        %1481 = vmatprep.subr.bf16.mxu0 0
        %1482 = vmatpush2.bf16.msra.mxu0 0
        %1483 = vmatprep.subr.bf16.mxu0 0
        %1484 = vmatpush2.bf16.msra.mxu0 0
        %1485 = vmatprep.subr.bf16.mxu0 0
        %1486 = vmatpush2.bf16.msra.mxu0 0
        %1487 = vmatprep.subr.bf16.mxu0 0
        %1488 = vmatpush2.bf16.msra.mxu0 0
        %1489 = vmatprep.subr.bf16.mxu0 0
        %1490 = vmatpush2.bf16.msra.mxu0 0
        %1491 = vmatprep.mubr.bf16.mxu0 0
        %1492 = vmatmul.mubr.bf16.gmra.mxu0 %v1457
        %v1493 = vpop.f32.mrf.mxu0
        %v1494 = vadd.f32 0.0, %v1493
        %v1495 = vpop.f32.mrf.mxu0
        %v1496 = vpop.f32.mrf.mxu0
        %v1497 = vadd.f32 0.0, %v1496
        %v1498 = vpop.f32.mrf.mxu0
        %1499 = vdwg.mxu0
        %1502 = vrot.lane.b32.xlu0 %v1494, 96
        %v1503 = vpop.permute.xlu0 %1502
        %1504 = vrot.lane.b32.xlu0 %v1497, 96
        %v1505 = vpop.permute.xlu0 %1504
        %v1508 = vadd.f32 %v1450, %v1503
        %v1509 = vadd.f32 %v1451, %v1505
        %vm1510 = vcmask 1048320
        %1511 = vst.msk [vmem:[#allocation6] sm:$0xff] %vm1510, %v1508
        %1512 = vst.msk [vmem:[#allocation6 + $0x8] sm:$0xff] %vm1510, %v1509
        %p1513 = scmp.eq.s32.totalorder %s36, 1
        // Predicated region
        $region81: #{tpu_custom_call.1} parent=51 // pred_check
          %p1514 = pneg %p1513
        $region82: #{tpu_custom_call.1} parent=51 // pred_check_branch
          %1516 = sbr.rel (%p1514) target = $region84
        $region83: #{tpu_custom_call.1} parent=51 // pred_region
          %v1517 = vld [vmem:[#allocation5] sm:$0xff]
          %v1518 = vld [vmem:[#allocation5 + $0x8] sm:$0xff]
          %v1519 = vrcp.pop %v1517
          %v1520 = vrcp.pop %v1518
          %v1521 = vld [vmem:[#allocation6] sm:$0xff]
          %v1522 = vld [vmem:[#allocation6 + $0x8] sm:$0xff]
          %1524 = vset.pattern.permute.xlu0 0
          %1525 = vperm.xlu0 %1524, %v1519
          %v1526 = vpop.permute.xlu0 %1525
          %1529 = vset.pattern.permute.xlu0 0
          %1530 = vperm.xlu0 %1529, %v1520
          %v1531 = vpop.permute.xlu0 %1530
          %v1533 = vmul.f32 %v1521, %v1526
          %v1534 = vmul.f32 %v1522, %v1531
          %1535 = vst.msk [vmem:[#allocation6] sm:$0xff] %vm797, %v1533
          %1536 = vst.msk [vmem:[#allocation6 + $0x8] sm:$0xff] %vm797, %v1534
          %v1537 = vld [vmem:[%s1025] sm:$0xff]
          %v1538 = vld [vmem:[%s1025 + $0x8] sm:$0xff]
          %v1539 = vrcp.pop %v1537
          %v1540 = vrcp.pop %v1538
          %v1541 = vld [vmem:[#allocation6] sm:$0xff]
          %v1542 = vld [vmem:[#allocation6 + $0x8] sm:$0xff]
          %1544 = vset.pattern.permute.xlu0 0
          %1545 = vperm.xlu0 %1544, %v1539
          %v1546 = vpop.permute.xlu0 %1545
          %1549 = vset.pattern.permute.xlu0 0
          %1550 = vperm.xlu0 %1549, %v1540
          %v1551 = vpop.permute.xlu0 %1550
          %v1553 = vmul.f32 %v1541, %v1546
          %v1554 = vmul.f32 %v1542, %v1551
          %1555 = vst.msk [vmem:[#allocation6] sm:$0xff] %vm1144, %v1553
          %1556 = vst.msk [vmem:[#allocation6 + $0x8] sm:$0xff] %vm1144, %v1554
          %v1557 = vld [vmem:[%s1208] sm:$0xff]
          %v1558 = vld [vmem:[%s1208 + $0x8] sm:$0xff]
          %v1559 = vrcp.pop %v1557
          %v1560 = vrcp.pop %v1558
          %v1561 = vld [vmem:[#allocation6] sm:$0xff]
          %v1562 = vld [vmem:[#allocation6 + $0x8] sm:$0xff]
          %1564 = vset.pattern.permute.xlu0 0
          %1565 = vperm.xlu0 %1564, %v1559
          %v1566 = vpop.permute.xlu0 %1565
          %1569 = vset.pattern.permute.xlu0 0
          %1570 = vperm.xlu0 %1569, %v1560
          %v1571 = vpop.permute.xlu0 %1570
          %v1573 = vmul.f32 %v1561, %v1566
          %v1574 = vmul.f32 %v1562, %v1571
          %1575 = vst.msk [vmem:[#allocation6] sm:$0xff] %vm1327, %v1573
          %1576 = vst.msk [vmem:[#allocation6 + $0x8] sm:$0xff] %vm1327, %v1574
          %v1577 = vld [vmem:[%s1391] sm:$0xff]
          %v1578 = vld [vmem:[%s1391 + $0x8] sm:$0xff]
          %v1579 = vrcp.pop %v1577
          %v1580 = vrcp.pop %v1578
          %v1581 = vld [vmem:[#allocation6] sm:$0xff]
          %v1582 = vld [vmem:[#allocation6 + $0x8] sm:$0xff]
          %1584 = vset.pattern.permute.xlu0 0
          %1585 = vperm.xlu0 %1584, %v1579
          %v1586 = vpop.permute.xlu0 %1585
          %1589 = vset.pattern.permute.xlu0 0
          %1590 = vperm.xlu0 %1589, %v1580
          %v1591 = vpop.permute.xlu0 %1590
          %v1593 = vmul.f32 %v1581, %v1586
          %v1594 = vmul.f32 %v1582, %v1591
          %1595 = vst.msk [vmem:[#allocation6] sm:$0xff] %vm1510, %v1593
          %1596 = vst.msk [vmem:[#allocation6 + $0x8] sm:$0xff] %vm1510, %v1594
          %v1597 = vld [vmem:[#allocation6] sm:$0xff]
          %v1598 = vld [vmem:[#allocation6 + $0x8] sm:$0xff]
          %v1599 = vpack.c.bf16 %v1598, %v1597
          %v1600 = vld [vmem:[#allocation15] sm:$0xf]
          %v1601 = vld [vmem:[#allocation15 + $0x4] sm:$0xf]
          %v1602 = vld [vmem:[#allocation15 + $0x8] sm:$0xf]
          %v1603 = vld [vmem:[#allocation15 + $0xc] sm:$0xf]
          %v1604 = vld [vmem:[#allocation15 + $0x10] sm:$0xf]
          %v1605 = vld [vmem:[#allocation15 + $0x14] sm:$0xf]
          %v1606 = vld [vmem:[#allocation15 + $0x18] sm:$0xf]
          %v1607 = vld [vmem:[#allocation15 + $0x1c] sm:$0xf]
          %v1608 = vld [vmem:[#allocation15 + $0x20] sm:$0xf]
          %v1609 = vld [vmem:[#allocation15 + $0x24] sm:$0xf]
          %v1610 = vld [vmem:[#allocation15 + $0x28] sm:$0xf]
          %v1611 = vld [vmem:[#allocation15 + $0x2c] sm:$0xf]
          %v1612 = vld [vmem:[#allocation15 + $0x30] sm:$0xf]
          %v1613 = vld [vmem:[#allocation15 + $0x34] sm:$0xf]
          %v1614 = vld [vmem:[#allocation15 + $0x38] sm:$0xf]
          %v1615 = vld [vmem:[#allocation15 + $0x3c] sm:$0xf]
          %v1616 = vld [vmem:[%s7] sm:$0x1]
          %v1618 = vlaneseq
          %v1619 = vshrl.u32 %v1618, 7
          %v1620 = vsub.s32 0, %v1619
          %v1621 = vrot.slane %v1616, %v1620
          %v1639 = vunpack.c.l.b16 %v1600
          %v1640 = vunpack.c.l.b16 %v1601
          %v1641 = vunpack.c.l.b16 %v1602
          %v1642 = vunpack.c.l.b16 %v1603
          %v1643 = vunpack.c.l.b16 %v1604
          %v1644 = vunpack.c.l.b16 %v1605
          %v1645 = vunpack.c.l.b16 %v1606
          %v1646 = vunpack.c.l.b16 %v1607
          %v1647 = vunpack.c.l.b16 %v1608
          %v1648 = vunpack.c.l.b16 %v1609
          %v1649 = vunpack.c.l.b16 %v1610
          %v1650 = vunpack.c.l.b16 %v1611
          %v1651 = vunpack.c.l.b16 %v1612
          %v1652 = vunpack.c.l.b16 %v1613
          %v1653 = vunpack.c.l.b16 %v1614
          %v1654 = vunpack.c.l.b16 %v1615
          %v1655 = vpack.c.b16 %v1640, %v1639
          %v1656 = vpack.c.b16 %v1642, %v1641
          %v1657 = vpack.c.b16 %v1644, %v1643
          %v1658 = vpack.c.b16 %v1646, %v1645
          %v1659 = vpack.c.b16 %v1648, %v1647
          %v1660 = vpack.c.b16 %v1650, %v1649
          %v1661 = vpack.c.b16 %v1652, %v1651
          %v1662 = vpack.c.b16 %v1654, %v1653
          %1671 = vmatprep.subr.bf16.mxu0 0
          %1672 = vmatpush1.bf16.msra.mxu0 %v1662
          %1673 = vmatprep.subr.bf16.mxu0 0
          %1674 = vmatpush1.bf16.msra.mxu0 %v1661
          %1675 = vmatprep.subr.bf16.mxu0 0
          %1676 = vmatpush1.bf16.msra.mxu0 %v1660
          %1677 = vmatprep.subr.bf16.mxu0 0
          %1678 = vmatpush1.bf16.msra.mxu0 %v1659
          %1679 = vmatprep.subr.bf16.mxu0 0
          %1680 = vmatpush1.bf16.msra.mxu0 %v1658
          %1681 = vmatprep.subr.bf16.mxu0 0
          %1682 = vmatpush1.bf16.msra.mxu0 %v1657
          %1683 = vmatprep.subr.bf16.mxu0 0
          %1684 = vmatpush1.bf16.msra.mxu0 %v1656
          %1685 = vmatprep.subr.bf16.mxu0 0
          %1686 = vmatpush1.bf16.msra.mxu0 %v1655
          %1687 = vmatprep.subr.bf16.mxu0 0
          %1688 = vmatpush2.bf16.msra.mxu0 0
          %1689 = vmatprep.subr.bf16.mxu0 0
          %1690 = vmatpush2.bf16.msra.mxu0 0
          %1691 = vmatprep.subr.bf16.mxu0 0
          %1692 = vmatpush2.bf16.msra.mxu0 0
          %1693 = vmatprep.subr.bf16.mxu0 0
          %1694 = vmatpush2.bf16.msra.mxu0 0
          %1695 = vmatprep.subr.bf16.mxu0 0
          %1696 = vmatpush2.bf16.msra.mxu0 0
          %1697 = vmatprep.subr.bf16.mxu0 0
          %1698 = vmatpush2.bf16.msra.mxu0 0
          %1699 = vmatprep.subr.bf16.mxu0 0
          %1700 = vmatpush2.bf16.msra.mxu0 0
          %1701 = vmatprep.subr.bf16.mxu0 0
          %1702 = vmatpush2.bf16.msra.mxu0 0
          %1703 = vmatprep.mubr.bf16.mxu0 0
          %1704 = vmatmul.mubr.bf16.gmra.mxu0 %v1599
          %v1705 = vpop.f32.mrf.mxu0
          %v1706 = vadd.f32 %v1621, %v1705
          %v1707 = vpop.f32.mrf.mxu0
          %v1708 = vpop.f32.mrf.mxu0
          %v1709 = vadd.f32 %v1621, %v1708
          %v1710 = vpop.f32.mrf.mxu0
          %1711 = vdwg.mxu0
          %1712 = vst [vmem:[%s441] sm:$0xff] %v1706
          %1713 = vst [vmem:[%s441 + $0x8] sm:$0xff] %v1709
        $region84: #{tpu_custom_call.1} parent=51 // pred_fallthru
          _
        %s1714 = sand.u32 %s244, 1
        %s1715 = scalar_lea.sflag [#allocation9], %s1714
        %s1716 = sand.u32 %s244, 1
        %s1717 = smul.addr %s1716, 16
        %s1718 = scalar_lea.vmem [#allocation16], %s1717
        // Predicated region
        $region85: #{tpu_custom_call.1} parent=51 // pred_check
          %p1719 = pneg %p254
        $region86: #{tpu_custom_call.1} parent=51 // pred_check_branch
          %1721 = sbr.rel (%p1719) target = $region88
        $region87: #{tpu_custom_call.1} parent=51 // pred_region
          %s1722 = smul.u32 2, %s35
          %s1724 = ssub.s32 256, 256
          %1725 = vsyncadd %s1715, %s1724
          %s1726 = smul.addr %s34, 4
          %s1727 = sadd.s32 %s1722, %s1726
          %s1728 = smul.addr %s1727, 128
          %s1729 = scalar_lea.hbm %s8, %s1728
          %s1730 = sshll.u32 %s1718, 4
          %s1731 = int_to_ptr.vmem [resolvable:$true] %s1730
          %1736 = dma.vmem_to_hbm [thread:$0]  %s1731, 256, %s1729, %s1715, 128, 128, 8
        $region88: #{tpu_custom_call.1} parent=51 // pred_fallthru
          _
      $region52: #{tpu_custom_call.1} parent=5 // pred_fallthru
        _
      %p1737 = scmp.le.s32.totalorder 2, %s24
      // Predicated region
      $region89: #{tpu_custom_call.1} parent=5 // pred_check
        %p1738 = pneg %p1737
      $region90: #{tpu_custom_call.1} parent=5 // pred_check_branch
        %1740 = sbr.rel (%p1738) target = $region92
      $region91: #{tpu_custom_call.1} parent=5 // pred_region
        %s1741 = ssub.s32 %s24, 2
        // Predicated region
        $region93: #{tpu_custom_call.1} parent=91 // pred_check
          %p1742 = pneg %p260
        $region94: #{tpu_custom_call.1} parent=91 // pred_check_branch
          %1744 = sbr.rel (%p1742) target = $region96
        $region95: #{tpu_custom_call.1} parent=91 // pred_region
          %s1745 = sand.u32 %s245, 1
          %s1746 = scalar_lea.sflag [#allocation9], %s1745
          %s1747 = sand.u32 %s245, 1
          %s1748 = smul.addr %s1747, 16
          %s1749 = scalar_lea.vmem [#allocation16], %s1748
          %1750 = dma.done %s1746, 256
        $region96: #{tpu_custom_call.1} parent=91 // pred_fallthru
          _
      $region92: #{tpu_custom_call.1} parent=5 // pred_fallthru
        _
    $region6: #{tpu_custom_call.1} parent=1 // loop_footer
      %s28 = sadd.s32 1, %s24
    $region7: #{tpu_custom_call.1} parent=1 // loop_footer_branch
      %23 = sbr.rel target = $region3
    $region8: #{tpu_custom_call.1} parent=1 // loop_exit
      _
    %1751 = vsyncpa [#allocation8], 1
    %s1752 = scalar_lea.sflag [#allocation8], 1
    %1753 = vsyncpa %s1752, 1
    %1754 = vsyncpa [#allocation11], 1
    %s1755 = scalar_lea.sflag [#allocation11], 1
    %1756 = vsyncpa %s1755, 1
    %1757 = vsyncpa [#allocation14], 1
    %1758 = vsyncpa [#allocation9], 1
    %s1759 = scalar_lea.sflag [#allocation9], 1
    %1760 = vsyncpa %s1759, 1

</llo_original>
